<compile_context>
chip_gen: v7x
topology: tpu7x:2x2x1
jax: 0.10.0
libtpu: 0.0.40
codegen_flags: <defaults>
</compile_context>

<pallas_src>
import jax
import jax.numpy as jnp
from jax.experimental import pallas as pl
from jax.experimental.pallas import tpu as pltpu


def _lstm_kernel(x_ref, wih_t_ref, whh_t_ref, b_ref, wlin_t_ref, blin_ref,
                 out_ref):
    # Shapes (all static):
    #   x_ref:      (seq * batch_p, in)      time-major, batch padded to 8
    #   wih_t_ref:  (in, 4H)
    #   whh_t_ref:  (H, 4H)
    #   b_ref:      (1, 4H)                  b_ih + b_hh, folded
    #   wlin_t_ref: (H, out)
    #   blin_ref:   (1, out)
    #   out_ref:    (batch_p, out)
    batch_p = out_ref.shape[0]
    hidden = whh_t_ref.shape[0]
    seq = x_ref.shape[0] // batch_p

    # Prologue: one matmul for the input projection of ALL timesteps, with the
    # bias broadcast hoisted out of the recurrence.
    xw = (jnp.dot(x_ref[...], wih_t_ref[...],
                  preferred_element_type=jnp.float32)
          + b_ref[...])                                   # (seq*batch_p, 4H)

    whh_t = whh_t_ref[...]                                # (H, 4H), loaded once

    h = jnp.zeros((batch_p, hidden), jnp.float32)
    c = jnp.zeros((batch_p, hidden), jnp.float32)

    # Recurrence: fully unrolled static loop; per-step work is a single small
    # MXU matmul plus EUP/VPU gate math. Slices are 8-row (sublane) aligned.
    for t in range(seq):
        gates = (xw[t * batch_p:(t + 1) * batch_p, :]
                 + jnp.dot(h, whh_t, preferred_element_type=jnp.float32))
        i_g = jax.nn.sigmoid(gates[:, 0 * hidden:1 * hidden])
        f_g = jax.nn.sigmoid(gates[:, 1 * hidden:2 * hidden])
        g_g = jnp.tanh(gates[:, 2 * hidden:3 * hidden])
        o_g = jax.nn.sigmoid(gates[:, 3 * hidden:4 * hidden])
        c = f_g * c + i_g * g_g
        h = o_g * jnp.tanh(c)

    # Linear head on the final hidden state.
    y = (jnp.dot(h, wlin_t_ref[...], preferred_element_type=jnp.float32)
         + blin_ref[...])
    out_ref[...] = y.astype(out_ref.dtype)


def lstm_model_forward(x, params):
    """x: (batch, seq, channels) float32 -> (batch, 1, channels) float32."""
    w_ih, w_hh, b_ih, b_hh, w_lin, b_lin = (
        params["w_ih"], params["w_hh"], params["b_ih"], params["b_hh"],
        params["w_lin"], params["b_lin"])

    batch, seq, in_size = x.shape
    hidden = w_hh.shape[1]
    out_size = w_lin.shape[0]

    # Pad batch up to a multiple of 8 (f32 sublane) so in-kernel row slices
    # stay tile-aligned; padded rows are independent and dropped afterwards.
    batch_p = ((batch + 7) // 8) * 8
    pad = batch_p - batch

    # Glue (plain XLA ops): time-major layout, batch pad, flatten to 2D,
    # pre-transpose all weights, fold the two bias vectors.
    x_tm = jnp.transpose(x, (1, 0, 2))                        # (seq, batch, in)
    if pad:
        x_tm = jnp.pad(x_tm, ((0, 0), (0, pad), (0, 0)))
    x2d = x_tm.reshape(seq * batch_p, in_size)                # (seq*batch_p, in)

    wih_t = w_ih.T                                            # (in, 4H)
    whh_t = w_hh.T                                            # (H, 4H)
    wlin_t = w_lin.T                                          # (H, out)
    b = (b_ih + b_hh).reshape(1, 4 * hidden)                  # (1, 4H)
    blin2 = b_lin.reshape(1, out_size)                        # (1, out)

    out = pl.pallas_call(
        _lstm_kernel,
        out_shape=jax.ShapeDtypeStruct((batch_p, out_size), jnp.float32),
        grid_spec=pltpu.PrefetchScalarGridSpec(
            num_scalar_prefetch=0,
            grid=(1,),
            in_specs=[
                pl.BlockSpec((seq * batch_p, in_size), lambda i: (0, 0)),  # x
                pl.BlockSpec((in_size, 4 * hidden), lambda i: (0, 0)),     # W_ih^T
                pl.BlockSpec((hidden, 4 * hidden), lambda i: (0, 0)),      # W_hh^T
                pl.BlockSpec((1, 4 * hidden), lambda i: (0, 0)),           # b
                pl.BlockSpec((hidden, out_size), lambda i: (0, 0)),        # W_lin^T
                pl.BlockSpec((1, out_size), lambda i: (0, 0)),             # b_lin
            ],
            out_specs=pl.BlockSpec((batch_p, out_size), lambda i: (0, 0)),
        ),
        compiler_params=pltpu.CompilerParams(
            dimension_semantics=("arbitrary",)),
    )(x2d, wih_t, whh_t, b, wlin_t, blin2)

    return out[:batch].reshape(batch, 1, out_size)


def _reference_forward(x, params):
    """Pure-JAX reference (mirrors torch single-layer LSTM, batch_first input)."""
    w_ih, w_hh = params["w_ih"], params["w_hh"]
    b = params["b_ih"] + params["b_hh"]
    hidden = w_hh.shape[1]
    x_tm = jnp.transpose(x, (1, 0, 2))

    def step(carry, x_t):
        h, c = carry
        gates = x_t @ w_ih.T + h @ w_hh.T + b
        i = jax.nn.sigmoid(gates[:, 0 * hidden:1 * hidden])
        f = jax.nn.sigmoid(gates[:, 1 * hidden:2 * hidden])
        g = jnp.tanh(gates[:, 2 * hidden:3 * hidden])
        o = jax.nn.sigmoid(gates[:, 3 * hidden:4 * hidden])
        c_new = f * c + i * g
        h_new = o * jnp.tanh(c_new)
        return (h_new, c_new), None

    batch = x.shape[0]
    h0 = jnp.zeros((batch, hidden), jnp.float32)
    c0 = jnp.zeros((batch, hidden), jnp.float32)
    (h_fin, _), _ = jax.lax.scan(step, (h0, c0), x_tm)
    y = h_fin @ params["w_lin"].T + params["b_lin"]
    return y.reshape(batch, 1, -1)


def make_params(key, input_size, hidden_size, output_size):
    ks = jax.random.split(key, 6)
    s = 1.0 / jnp.sqrt(hidden_size)
    u = lambda k, shape: jax.random.uniform(k, shape, jnp.float32, -s, s)
    return {
        "w_ih":  u(ks[0], (4 * hidden_size, input_size)),
        "w_hh":  u(ks[1], (4 * hidden_size, hidden_size)),
        "b_ih":  u(ks[2], (4 * hidden_size,)),
        "b_hh":  u(ks[3], (4 * hidden_size,)),
        "w_lin": u(ks[4], (output_size, hidden_size)),
        "b_lin": u(ks[5], (output_size,)),
    }


if __name__ == "__main__":
    # Module config: input_shape = (n_input=12, n_channels); hidden=64; n_layers=1
    batch, seq, channels, hidden = 2, 12, 4, 64

    key = jax.random.PRNGKey(0)
    kx, kp = jax.random.split(key)
    x = jax.random.normal(kx, (batch, seq, channels), jnp.float32)
    params = make_params(kp, channels, hidden, channels)

    out = jax.block_until_ready(lstm_model_forward(x, params))
    ref = jax.block_until_ready(_reference_forward(x, params))

    assert out.shape == (batch, 1, channels), out.shape
    assert jnp.allclose(out, ref, atol=2e-4, rtol=2e-4), float(jnp.abs(out - ref).max())
    print("KERNEL_OK")
</pallas_src>

<mosaic_0001>
module attributes {stable_mosaic.version = 11 : i64} {
  func.func @_lstm_kernel(%arg0: i32, %arg1: memref<96x4xf32, #tpu.memory_space<vmem>>, %arg2: memref<4x256xf32, #tpu.memory_space<vmem>>, %arg3: memref<64x256xf32, #tpu.memory_space<vmem>>, %arg4: memref<1x256xf32, #tpu.memory_space<vmem>>, %arg5: memref<64x4xf32, #tpu.memory_space<vmem>>, %arg6: memref<1x4xf32, #tpu.memory_space<vmem>>, %arg7: memref<8x4xf32, #tpu.memory_space<vmem>>) attributes {dimension_semantics = [#tpu.dimension_semantics<arbitrary>], iteration_bounds = array<i64: 1>, scalar_prefetch = 0 : i64, scratch_operands = 0 : i64, tpu.core_type = #tpu.core_type<tc>, window_params = [{pipeline_mode = #tpu.pipeline_mode<synchronous>, transform_indices = @transform_0, window_bounds = array<i64: 96, 4>}, {pipeline_mode = #tpu.pipeline_mode<synchronous>, transform_indices = @transform_1, window_bounds = array<i64: 4, 256>}, {pipeline_mode = #tpu.pipeline_mode<synchronous>, transform_indices = @transform_2, window_bounds = array<i64: 64, 256>}, {pipeline_mode = #tpu.pipeline_mode<synchronous>, transform_indices = @transform_3, window_bounds = array<i64: 1, 256>}, {pipeline_mode = #tpu.pipeline_mode<synchronous>, transform_indices = @transform_4, window_bounds = array<i64: 64, 4>}, {pipeline_mode = #tpu.pipeline_mode<synchronous>, transform_indices = @transform_5, window_bounds = array<i64: 1, 4>}, {pipeline_mode = #tpu.pipeline_mode<synchronous>, transform_indices = @transform_6, window_bounds = array<i64: 8, 4>}]} {
    %c0 = arith.constant 0 : index
    %c0_0 = arith.constant 0 : index
    %0 = vector.load %arg1[%c0, %c0_0] : memref<96x4xf32, #tpu.memory_space<vmem>>, vector<96x4xf32>
    %c0_1 = arith.constant 0 : index
    %c0_2 = arith.constant 0 : index
    %1 = vector.load %arg2[%c0_1, %c0_2] : memref<4x256xf32, #tpu.memory_space<vmem>>, vector<4x256xf32>
    %cst = arith.constant dense<0.000000e+00> : vector<96x256xf32>
    %2 = tpu.matmul %0, %1, %cst {dimension_numbers = #tpu.dot_dimension_numbers<[1], [0], [0], [1], [0, 0, 1, 1], [], []>} : vector<96x4xf32>, vector<4x256xf32>, vector<96x256xf32> -> vector<96x256xf32>
    %c0_3 = arith.constant 0 : index
    %c0_4 = arith.constant 0 : index
    %3 = vector.load %arg4[%c0_3, %c0_4] : memref<1x256xf32, #tpu.memory_space<vmem>>, vector<1x256xf32>
    %4 = vector.broadcast %3 : vector<1x256xf32> to vector<96x256xf32>
    %5 = arith.addf %2, %4 : vector<96x256xf32>
    %c0_5 = arith.constant 0 : index
    %c0_6 = arith.constant 0 : index
    %6 = vector.load %arg3[%c0_5, %c0_6] : memref<64x256xf32, #tpu.memory_space<vmem>>, vector<64x256xf32>
    %cst_7 = arith.constant 0.000000e+00 : f32
    %7 = vector.broadcast %cst_7 : f32 to vector<8x64xf32>
    %cst_8 = arith.constant 0.000000e+00 : f32
    %8 = vector.broadcast %cst_8 : f32 to vector<8x64xf32>
    %9 = vector.extract_strided_slice %5 {offsets = [0, 0], sizes = [8, 256], strides = [1, 1]} : vector<96x256xf32> to vector<8x256xf32>
    %cst_9 = arith.constant dense<0.000000e+00> : vector<8x256xf32>
    %10 = tpu.matmul %7, %6, %cst_9 {dimension_numbers = #tpu.dot_dimension_numbers<[1], [0], [0], [1], [0, 0, 1, 1], [], []>} : vector<8x64xf32>, vector<64x256xf32>, vector<8x256xf32> -> vector<8x256xf32>
    %11 = arith.addf %9, %10 : vector<8x256xf32>
    %12 = vector.extract_strided_slice %11 {offsets = [0, 0], sizes = [8, 64], strides = [1, 1]} : vector<8x256xf32> to vector<8x64xf32>
    %13 = arith.negf %12 : vector<8x64xf32>
    %14 = math.exp %13 : vector<8x64xf32>
    %cst_10 = arith.constant 1.000000e+00 : f32
    %15 = vector.broadcast %cst_10 : f32 to vector<8x64xf32>
    %16 = arith.addf %15, %14 : vector<8x64xf32>
    %17 = arith.divf %15, %16 : vector<8x64xf32>
    %18 = vector.extract_strided_slice %11 {offsets = [0, 64], sizes = [8, 64], strides = [1, 1]} : vector<8x256xf32> to vector<8x64xf32>
    %19 = arith.negf %18 : vector<8x64xf32>
    %20 = math.exp %19 : vector<8x64xf32>
    %cst_11 = arith.constant 1.000000e+00 : f32
    %21 = vector.broadcast %cst_11 : f32 to vector<8x64xf32>
    %22 = arith.addf %21, %20 : vector<8x64xf32>
    %23 = arith.divf %21, %22 : vector<8x64xf32>
    %24 = vector.extract_strided_slice %11 {offsets = [0, 128], sizes = [8, 64], strides = [1, 1]} : vector<8x256xf32> to vector<8x64xf32>
    %25 = math.tanh %24 : vector<8x64xf32>
    %26 = vector.extract_strided_slice %11 {offsets = [0, 192], sizes = [8, 64], strides = [1, 1]} : vector<8x256xf32> to vector<8x64xf32>
    %27 = arith.negf %26 : vector<8x64xf32>
    %28 = math.exp %27 : vector<8x64xf32>
    %cst_12 = arith.constant 1.000000e+00 : f32
    %29 = vector.broadcast %cst_12 : f32 to vector<8x64xf32>
    %30 = arith.addf %29, %28 : vector<8x64xf32>
    %31 = arith.divf %29, %30 : vector<8x64xf32>
    %32 = arith.mulf %23, %8 : vector<8x64xf32>
    %33 = arith.mulf %17, %25 : vector<8x64xf32>
    %34 = arith.addf %32, %33 : vector<8x64xf32>
    %35 = math.tanh %34 : vector<8x64xf32>
    %36 = arith.mulf %31, %35 : vector<8x64xf32>
    %37 = vector.extract_strided_slice %5 {offsets = [8, 0], sizes = [8, 256], strides = [1, 1]} : vector<96x256xf32> to vector<8x256xf32>
    %cst_13 = arith.constant dense<0.000000e+00> : vector<8x256xf32>
    %38 = tpu.matmul %36, %6, %cst_13 {dimension_numbers = #tpu.dot_dimension_numbers<[1], [0], [0], [1], [0, 0, 1, 1], [], []>} : vector<8x64xf32>, vector<64x256xf32>, vector<8x256xf32> -> vector<8x256xf32>
    %39 = arith.addf %37, %38 : vector<8x256xf32>
    %40 = vector.extract_strided_slice %39 {offsets = [0, 0], sizes = [8, 64], strides = [1, 1]} : vector<8x256xf32> to vector<8x64xf32>
    %41 = arith.negf %40 : vector<8x64xf32>
    %42 = math.exp %41 : vector<8x64xf32>
    %cst_14 = arith.constant 1.000000e+00 : f32
    %43 = vector.broadcast %cst_14 : f32 to vector<8x64xf32>
    %44 = arith.addf %43, %42 : vector<8x64xf32>
    %45 = arith.divf %43, %44 : vector<8x64xf32>
    %46 = vector.extract_strided_slice %39 {offsets = [0, 64], sizes = [8, 64], strides = [1, 1]} : vector<8x256xf32> to vector<8x64xf32>
    %47 = arith.negf %46 : vector<8x64xf32>
    %48 = math.exp %47 : vector<8x64xf32>
    %cst_15 = arith.constant 1.000000e+00 : f32
    %49 = vector.broadcast %cst_15 : f32 to vector<8x64xf32>
    %50 = arith.addf %49, %48 : vector<8x64xf32>
    %51 = arith.divf %49, %50 : vector<8x64xf32>
    %52 = vector.extract_strided_slice %39 {offsets = [0, 128], sizes = [8, 64], strides = [1, 1]} : vector<8x256xf32> to vector<8x64xf32>
    %53 = math.tanh %52 : vector<8x64xf32>
    %54 = vector.extract_strided_slice %39 {offsets = [0, 192], sizes = [8, 64], strides = [1, 1]} : vector<8x256xf32> to vector<8x64xf32>
    %55 = arith.negf %54 : vector<8x64xf32>
    %56 = math.exp %55 : vector<8x64xf32>
    %cst_16 = arith.constant 1.000000e+00 : f32
    %57 = vector.broadcast %cst_16 : f32 to vector<8x64xf32>
    %58 = arith.addf %57, %56 : vector<8x64xf32>
    %59 = arith.divf %57, %58 : vector<8x64xf32>
    %60 = arith.mulf %51, %34 : vector<8x64xf32>
    %61 = arith.mulf %45, %53 : vector<8x64xf32>
    %62 = arith.addf %60, %61 : vector<8x64xf32>
    %63 = math.tanh %62 : vector<8x64xf32>
    %64 = arith.mulf %59, %63 : vector<8x64xf32>
    %65 = vector.extract_strided_slice %5 {offsets = [16, 0], sizes = [8, 256], strides = [1, 1]} : vector<96x256xf32> to vector<8x256xf32>
    %cst_17 = arith.constant dense<0.000000e+00> : vector<8x256xf32>
    %66 = tpu.matmul %64, %6, %cst_17 {dimension_numbers = #tpu.dot_dimension_numbers<[1], [0], [0], [1], [0, 0, 1, 1], [], []>} : vector<8x64xf32>, vector<64x256xf32>, vector<8x256xf32> -> vector<8x256xf32>
    %67 = arith.addf %65, %66 : vector<8x256xf32>
    %68 = vector.extract_strided_slice %67 {offsets = [0, 0], sizes = [8, 64], strides = [1, 1]} : vector<8x256xf32> to vector<8x64xf32>
    %69 = arith.negf %68 : vector<8x64xf32>
    %70 = math.exp %69 : vector<8x64xf32>
    %cst_18 = arith.constant 1.000000e+00 : f32
    %71 = vector.broadcast %cst_18 : f32 to vector<8x64xf32>
    %72 = arith.addf %71, %70 : vector<8x64xf32>
    %73 = arith.divf %71, %72 : vector<8x64xf32>
    %74 = vector.extract_strided_slice %67 {offsets = [0, 64], sizes = [8, 64], strides = [1, 1]} : vector<8x256xf32> to vector<8x64xf32>
    %75 = arith.negf %74 : vector<8x64xf32>
    %76 = math.exp %75 : vector<8x64xf32>
    %cst_19 = arith.constant 1.000000e+00 : f32
    %77 = vector.broadcast %cst_19 : f32 to vector<8x64xf32>
    %78 = arith.addf %77, %76 : vector<8x64xf32>
    %79 = arith.divf %77, %78 : vector<8x64xf32>
    %80 = vector.extract_strided_slice %67 {offsets = [0, 128], sizes = [8, 64], strides = [1, 1]} : vector<8x256xf32> to vector<8x64xf32>
    %81 = math.tanh %80 : vector<8x64xf32>
    %82 = vector.extract_strided_slice %67 {offsets = [0, 192], sizes = [8, 64], strides = [1, 1]} : vector<8x256xf32> to vector<8x64xf32>
    %83 = arith.negf %82 : vector<8x64xf32>
    %84 = math.exp %83 : vector<8x64xf32>
    %cst_20 = arith.constant 1.000000e+00 : f32
    %85 = vector.broadcast %cst_20 : f32 to vector<8x64xf32>
    %86 = arith.addf %85, %84 : vector<8x64xf32>
    %87 = arith.divf %85, %86 : vector<8x64xf32>
    %88 = arith.mulf %79, %62 : vector<8x64xf32>
    %89 = arith.mulf %73, %81 : vector<8x64xf32>
    %90 = arith.addf %88, %89 : vector<8x64xf32>
    %91 = math.tanh %90 : vector<8x64xf32>
    %92 = arith.mulf %87, %91 : vector<8x64xf32>
    %93 = vector.extract_strided_slice %5 {offsets = [24, 0], sizes = [8, 256], strides = [1, 1]} : vector<96x256xf32> to vector<8x256xf32>
    %cst_21 = arith.constant dense<0.000000e+00> : vector<8x256xf32>
    %94 = tpu.matmul %92, %6, %cst_21 {dimension_numbers = #tpu.dot_dimension_numbers<[1], [0], [0], [1], [0, 0, 1, 1], [], []>} : vector<8x64xf32>, vector<64x256xf32>, vector<8x256xf32> -> vector<8x256xf32>
    %95 = arith.addf %93, %94 : vector<8x256xf32>
    %96 = vector.extract_strided_slice %95 {offsets = [0, 0], sizes = [8, 64], strides = [1, 1]} : vector<8x256xf32> to vector<8x64xf32>
    %97 = arith.negf %96 : vector<8x64xf32>
    %98 = math.exp %97 : vector<8x64xf32>
    %cst_22 = arith.constant 1.000000e+00 : f32
    %99 = vector.broadcast %cst_22 : f32 to vector<8x64xf32>
    %100 = arith.addf %99, %98 : vector<8x64xf32>
    %101 = arith.divf %99, %100 : vector<8x64xf32>
    %102 = vector.extract_strided_slice %95 {offsets = [0, 64], sizes = [8, 64], strides = [1, 1]} : vector<8x256xf32> to vector<8x64xf32>
    %103 = arith.negf %102 : vector<8x64xf32>
    %104 = math.exp %103 : vector<8x64xf32>
    %cst_23 = arith.constant 1.000000e+00 : f32
    %105 = vector.broadcast %cst_23 : f32 to vector<8x64xf32>
    %106 = arith.addf %105, %104 : vector<8x64xf32>
    %107 = arith.divf %105, %106 : vector<8x64xf32>
    %108 = vector.extract_strided_slice %95 {offsets = [0, 128], sizes = [8, 64], strides = [1, 1]} : vector<8x256xf32> to vector<8x64xf32>
    %109 = math.tanh %108 : vector<8x64xf32>
    %110 = vector.extract_strided_slice %95 {offsets = [0, 192], sizes = [8, 64], strides = [1, 1]} : vector<8x256xf32> to vector<8x64xf32>
    %111 = arith.negf %110 : vector<8x64xf32>
    %112 = math.exp %111 : vector<8x64xf32>
    %cst_24 = arith.constant 1.000000e+00 : f32
    %113 = vector.broadcast %cst_24 : f32 to vector<8x64xf32>
    %114 = arith.addf %113, %112 : vector<8x64xf32>
    %115 = arith.divf %113, %114 : vector<8x64xf32>
    %116 = arith.mulf %107, %90 : vector<8x64xf32>
    %117 = arith.mulf %101, %109 : vector<8x64xf32>
    %118 = arith.addf %116, %117 : vector<8x64xf32>
    %119 = math.tanh %118 : vector<8x64xf32>
    %120 = arith.mulf %115, %119 : vector<8x64xf32>
    %121 = vector.extract_strided_slice %5 {offsets = [32, 0], sizes = [8, 256], strides = [1, 1]} : vector<96x256xf32> to vector<8x256xf32>
    %cst_25 = arith.constant dense<0.000000e+00> : vector<8x256xf32>
    %122 = tpu.matmul %120, %6, %cst_25 {dimension_numbers = #tpu.dot_dimension_numbers<[1], [0], [0], [1], [0, 0, 1, 1], [], []>} : vector<8x64xf32>, vector<64x256xf32>, vector<8x256xf32> -> vector<8x256xf32>
    %123 = arith.addf %121, %122 : vector<8x256xf32>
    %124 = vector.extract_strided_slice %123 {offsets = [0, 0], sizes = [8, 64], strides = [1, 1]} : vector<8x256xf32> to vector<8x64xf32>
    %125 = arith.negf %124 : vector<8x64xf32>
    %126 = math.exp %125 : vector<8x64xf32>
    %cst_26 = arith.constant 1.000000e+00 : f32
    %127 = vector.broadcast %cst_26 : f32 to vector<8x64xf32>
    %128 = arith.addf %127, %126 : vector<8x64xf32>
    %129 = arith.divf %127, %128 : vector<8x64xf32>
    %130 = vector.extract_strided_slice %123 {offsets = [0, 64], sizes = [8, 64], strides = [1, 1]} : vector<8x256xf32> to vector<8x64xf32>
    %131 = arith.negf %130 : vector<8x64xf32>
    %132 = math.exp %131 : vector<8x64xf32>
    %cst_27 = arith.constant 1.000000e+00 : f32
    %133 = vector.broadcast %cst_27 : f32 to vector<8x64xf32>
    %134 = arith.addf %133, %132 : vector<8x64xf32>
    %135 = arith.divf %133, %134 : vector<8x64xf32>
    %136 = vector.extract_strided_slice %123 {offsets = [0, 128], sizes = [8, 64], strides = [1, 1]} : vector<8x256xf32> to vector<8x64xf32>
    %137 = math.tanh %136 : vector<8x64xf32>
    %138 = vector.extract_strided_slice %123 {offsets = [0, 192], sizes = [8, 64], strides = [1, 1]} : vector<8x256xf32> to vector<8x64xf32>
    %139 = arith.negf %138 : vector<8x64xf32>
    %140 = math.exp %139 : vector<8x64xf32>
    %cst_28 = arith.constant 1.000000e+00 : f32
    %141 = vector.broadcast %cst_28 : f32 to vector<8x64xf32>
    %142 = arith.addf %141, %140 : vector<8x64xf32>
    %143 = arith.divf %141, %142 : vector<8x64xf32>
    %144 = arith.mulf %135, %118 : vector<8x64xf32>
    %145 = arith.mulf %129, %137 : vector<8x64xf32>
    %146 = arith.addf %144, %145 : vector<8x64xf32>
    %147 = math.tanh %146 : vector<8x64xf32>
    %148 = arith.mulf %143, %147 : vector<8x64xf32>
    %149 = vector.extract_strided_slice %5 {offsets = [40, 0], sizes = [8, 256], strides = [1, 1]} : vector<96x256xf32> to vector<8x256xf32>
    %cst_29 = arith.constant dense<0.000000e+00> : vector<8x256xf32>
    %150 = tpu.matmul %148, %6, %cst_29 {dimension_numbers = #tpu.dot_dimension_numbers<[1], [0], [0], [1], [0, 0, 1, 1], [], []>} : vector<8x64xf32>, vector<64x256xf32>, vector<8x256xf32> -> vector<8x256xf32>
    %151 = arith.addf %149, %150 : vector<8x256xf32>
    %152 = vector.extract_strided_slice %151 {offsets = [0, 0], sizes = [8, 64], strides = [1, 1]} : vector<8x256xf32> to vector<8x64xf32>
    %153 = arith.negf %152 : vector<8x64xf32>
    %154 = math.exp %153 : vector<8x64xf32>
    %cst_30 = arith.constant 1.000000e+00 : f32
    %155 = vector.broadcast %cst_30 : f32 to vector<8x64xf32>
    %156 = arith.addf %155, %154 : vector<8x64xf32>
    %157 = arith.divf %155, %156 : vector<8x64xf32>
    %158 = vector.extract_strided_slice %151 {offsets = [0, 64], sizes = [8, 64], strides = [1, 1]} : vector<8x256xf32> to vector<8x64xf32>
    %159 = arith.negf %158 : vector<8x64xf32>
    %160 = math.exp %159 : vector<8x64xf32>
    %cst_31 = arith.constant 1.000000e+00 : f32
    %161 = vector.broadcast %cst_31 : f32 to vector<8x64xf32>
    %162 = arith.addf %161, %160 : vector<8x64xf32>
    %163 = arith.divf %161, %162 : vector<8x64xf32>
    %164 = vector.extract_strided_slice %151 {offsets = [0, 128], sizes = [8, 64], strides = [1, 1]} : vector<8x256xf32> to vector<8x64xf32>
    %165 = math.tanh %164 : vector<8x64xf32>
    %166 = vector.extract_strided_slice %151 {offsets = [0, 192], sizes = [8, 64], strides = [1, 1]} : vector<8x256xf32> to vector<8x64xf32>
    %167 = arith.negf %166 : vector<8x64xf32>
    %168 = math.exp %167 : vector<8x64xf32>
    %cst_32 = arith.constant 1.000000e+00 : f32
    %169 = vector.broadcast %cst_32 : f32 to vector<8x64xf32>
    %170 = arith.addf %169, %168 : vector<8x64xf32>
    %171 = arith.divf %169, %170 : vector<8x64xf32>
    %172 = arith.mulf %163, %146 : vector<8x64xf32>
    %173 = arith.mulf %157, %165 : vector<8x64xf32>
    %174 = arith.addf %172, %173 : vector<8x64xf32>
    %175 = math.tanh %174 : vector<8x64xf32>
    %176 = arith.mulf %171, %175 : vector<8x64xf32>
    %177 = vector.extract_strided_slice %5 {offsets = [48, 0], sizes = [8, 256], strides = [1, 1]} : vector<96x256xf32> to vector<8x256xf32>
    %cst_33 = arith.constant dense<0.000000e+00> : vector<8x256xf32>
    %178 = tpu.matmul %176, %6, %cst_33 {dimension_numbers = #tpu.dot_dimension_numbers<[1], [0], [0], [1], [0, 0, 1, 1], [], []>} : vector<8x64xf32>, vector<64x256xf32>, vector<8x256xf32> -> vector<8x256xf32>
    %179 = arith.addf %177, %178 : vector<8x256xf32>
    %180 = vector.extract_strided_slice %179 {offsets = [0, 0], sizes = [8, 64], strides = [1, 1]} : vector<8x256xf32> to vector<8x64xf32>
    %181 = arith.negf %180 : vector<8x64xf32>
    %182 = math.exp %181 : vector<8x64xf32>
    %cst_34 = arith.constant 1.000000e+00 : f32
    %183 = vector.broadcast %cst_34 : f32 to vector<8x64xf32>
    %184 = arith.addf %183, %182 : vector<8x64xf32>
    %185 = arith.divf %183, %184 : vector<8x64xf32>
    %186 = vector.extract_strided_slice %179 {offsets = [0, 64], sizes = [8, 64], strides = [1, 1]} : vector<8x256xf32> to vector<8x64xf32>
    %187 = arith.negf %186 : vector<8x64xf32>
    %188 = math.exp %187 : vector<8x64xf32>
    %cst_35 = arith.constant 1.000000e+00 : f32
    %189 = vector.broadcast %cst_35 : f32 to vector<8x64xf32>
    %190 = arith.addf %189, %188 : vector<8x64xf32>
    %191 = arith.divf %189, %190 : vector<8x64xf32>
    %192 = vector.extract_strided_slice %179 {offsets = [0, 128], sizes = [8, 64], strides = [1, 1]} : vector<8x256xf32> to vector<8x64xf32>
    %193 = math.tanh %192 : vector<8x64xf32>
    %194 = vector.extract_strided_slice %179 {offsets = [0, 192], sizes = [8, 64], strides = [1, 1]} : vector<8x256xf32> to vector<8x64xf32>
    %195 = arith.negf %194 : vector<8x64xf32>
    %196 = math.exp %195 : vector<8x64xf32>
    %cst_36 = arith.constant 1.000000e+00 : f32
    %197 = vector.broadcast %cst_36 : f32 to vector<8x64xf32>
    %198 = arith.addf %197, %196 : vector<8x64xf32>
    %199 = arith.divf %197, %198 : vector<8x64xf32>
    %200 = arith.mulf %191, %174 : vector<8x64xf32>
    %201 = arith.mulf %185, %193 : vector<8x64xf32>
    %202 = arith.addf %200, %201 : vector<8x64xf32>
    %203 = math.tanh %202 : vector<8x64xf32>
    %204 = arith.mulf %199, %203 : vector<8x64xf32>
    %205 = vector.extract_strided_slice %5 {offsets = [56, 0], sizes = [8, 256], strides = [1, 1]} : vector<96x256xf32> to vector<8x256xf32>
    %cst_37 = arith.constant dense<0.000000e+00> : vector<8x256xf32>
    %206 = tpu.matmul %204, %6, %cst_37 {dimension_numbers = #tpu.dot_dimension_numbers<[1], [0], [0], [1], [0, 0, 1, 1], [], []>} : vector<8x64xf32>, vector<64x256xf32>, vector<8x256xf32> -> vector<8x256xf32>
    %207 = arith.addf %205, %206 : vector<8x256xf32>
    %208 = vector.extract_strided_slice %207 {offsets = [0, 0], sizes = [8, 64], strides = [1, 1]} : vector<8x256xf32> to vector<8x64xf32>
    %209 = arith.negf %208 : vector<8x64xf32>
    %210 = math.exp %209 : vector<8x64xf32>
    %cst_38 = arith.constant 1.000000e+00 : f32
    %211 = vector.broadcast %cst_38 : f32 to vector<8x64xf32>
    %212 = arith.addf %211, %210 : vector<8x64xf32>
    %213 = arith.divf %211, %212 : vector<8x64xf32>
    %214 = vector.extract_strided_slice %207 {offsets = [0, 64], sizes = [8, 64], strides = [1, 1]} : vector<8x256xf32> to vector<8x64xf32>
    %215 = arith.negf %214 : vector<8x64xf32>
    %216 = math.exp %215 : vector<8x64xf32>
    %cst_39 = arith.constant 1.000000e+00 : f32
    %217 = vector.broadcast %cst_39 : f32 to vector<8x64xf32>
    %218 = arith.addf %217, %216 : vector<8x64xf32>
    %219 = arith.divf %217, %218 : vector<8x64xf32>
    %220 = vector.extract_strided_slice %207 {offsets = [0, 128], sizes = [8, 64], strides = [1, 1]} : vector<8x256xf32> to vector<8x64xf32>
    %221 = math.tanh %220 : vector<8x64xf32>
    %222 = vector.extract_strided_slice %207 {offsets = [0, 192], sizes = [8, 64], strides = [1, 1]} : vector<8x256xf32> to vector<8x64xf32>
    %223 = arith.negf %222 : vector<8x64xf32>
    %224 = math.exp %223 : vector<8x64xf32>
    %cst_40 = arith.constant 1.000000e+00 : f32
    %225 = vector.broadcast %cst_40 : f32 to vector<8x64xf32>
    %226 = arith.addf %225, %224 : vector<8x64xf32>
    %227 = arith.divf %225, %226 : vector<8x64xf32>
    %228 = arith.mulf %219, %202 : vector<8x64xf32>
    %229 = arith.mulf %213, %221 : vector<8x64xf32>
    %230 = arith.addf %228, %229 : vector<8x64xf32>
    %231 = math.tanh %230 : vector<8x64xf32>
    %232 = arith.mulf %227, %231 : vector<8x64xf32>
    %233 = vector.extract_strided_slice %5 {offsets = [64, 0], sizes = [8, 256], strides = [1, 1]} : vector<96x256xf32> to vector<8x256xf32>
    %cst_41 = arith.constant dense<0.000000e+00> : vector<8x256xf32>
    %234 = tpu.matmul %232, %6, %cst_41 {dimension_numbers = #tpu.dot_dimension_numbers<[1], [0], [0], [1], [0, 0, 1, 1], [], []>} : vector<8x64xf32>, vector<64x256xf32>, vector<8x256xf32> -> vector<8x256xf32>
    %235 = arith.addf %233, %234 : vector<8x256xf32>
    %236 = vector.extract_strided_slice %235 {offsets = [0, 0], sizes = [8, 64], strides = [1, 1]} : vector<8x256xf32> to vector<8x64xf32>
    %237 = arith.negf %236 : vector<8x64xf32>
    %238 = math.exp %237 : vector<8x64xf32>
    %cst_42 = arith.constant 1.000000e+00 : f32
    %239 = vector.broadcast %cst_42 : f32 to vector<8x64xf32>
    %240 = arith.addf %239, %238 : vector<8x64xf32>
    %241 = arith.divf %239, %240 : vector<8x64xf32>
    %242 = vector.extract_strided_slice %235 {offsets = [0, 64], sizes = [8, 64], strides = [1, 1]} : vector<8x256xf32> to vector<8x64xf32>
    %243 = arith.negf %242 : vector<8x64xf32>
    %244 = math.exp %243 : vector<8x64xf32>
    %cst_43 = arith.constant 1.000000e+00 : f32
    %245 = vector.broadcast %cst_43 : f32 to vector<8x64xf32>
    %246 = arith.addf %245, %244 : vector<8x64xf32>
    %247 = arith.divf %245, %246 : vector<8x64xf32>
    %248 = vector.extract_strided_slice %235 {offsets = [0, 128], sizes = [8, 64], strides = [1, 1]} : vector<8x256xf32> to vector<8x64xf32>
    %249 = math.tanh %248 : vector<8x64xf32>
    %250 = vector.extract_strided_slice %235 {offsets = [0, 192], sizes = [8, 64], strides = [1, 1]} : vector<8x256xf32> to vector<8x64xf32>
    %251 = arith.negf %250 : vector<8x64xf32>
    %252 = math.exp %251 : vector<8x64xf32>
    %cst_44 = arith.constant 1.000000e+00 : f32
    %253 = vector.broadcast %cst_44 : f32 to vector<8x64xf32>
    %254 = arith.addf %253, %252 : vector<8x64xf32>
    %255 = arith.divf %253, %254 : vector<8x64xf32>
    %256 = arith.mulf %247, %230 : vector<8x64xf32>
    %257 = arith.mulf %241, %249 : vector<8x64xf32>
    %258 = arith.addf %256, %257 : vector<8x64xf32>
    %259 = math.tanh %258 : vector<8x64xf32>
    %260 = arith.mulf %255, %259 : vector<8x64xf32>
    %261 = vector.extract_strided_slice %5 {offsets = [72, 0], sizes = [8, 256], strides = [1, 1]} : vector<96x256xf32> to vector<8x256xf32>
    %cst_45 = arith.constant dense<0.000000e+00> : vector<8x256xf32>
    %262 = tpu.matmul %260, %6, %cst_45 {dimension_numbers = #tpu.dot_dimension_numbers<[1], [0], [0], [1], [0, 0, 1, 1], [], []>} : vector<8x64xf32>, vector<64x256xf32>, vector<8x256xf32> -> vector<8x256xf32>
    %263 = arith.addf %261, %262 : vector<8x256xf32>
    %264 = vector.extract_strided_slice %263 {offsets = [0, 0], sizes = [8, 64], strides = [1, 1]} : vector<8x256xf32> to vector<8x64xf32>
    %265 = arith.negf %264 : vector<8x64xf32>
    %266 = math.exp %265 : vector<8x64xf32>
    %cst_46 = arith.constant 1.000000e+00 : f32
    %267 = vector.broadcast %cst_46 : f32 to vector<8x64xf32>
    %268 = arith.addf %267, %266 : vector<8x64xf32>
    %269 = arith.divf %267, %268 : vector<8x64xf32>
    %270 = vector.extract_strided_slice %263 {offsets = [0, 64], sizes = [8, 64], strides = [1, 1]} : vector<8x256xf32> to vector<8x64xf32>
    %271 = arith.negf %270 : vector<8x64xf32>
    %272 = math.exp %271 : vector<8x64xf32>
    %cst_47 = arith.constant 1.000000e+00 : f32
    %273 = vector.broadcast %cst_47 : f32 to vector<8x64xf32>
    %274 = arith.addf %273, %272 : vector<8x64xf32>
    %275 = arith.divf %273, %274 : vector<8x64xf32>
    %276 = vector.extract_strided_slice %263 {offsets = [0, 128], sizes = [8, 64], strides = [1, 1]} : vector<8x256xf32> to vector<8x64xf32>
    %277 = math.tanh %276 : vector<8x64xf32>
    %278 = vector.extract_strided_slice %263 {offsets = [0, 192], sizes = [8, 64], strides = [1, 1]} : vector<8x256xf32> to vector<8x64xf32>
    %279 = arith.negf %278 : vector<8x64xf32>
    %280 = math.exp %279 : vector<8x64xf32>
    %cst_48 = arith.constant 1.000000e+00 : f32
    %281 = vector.broadcast %cst_48 : f32 to vector<8x64xf32>
    %282 = arith.addf %281, %280 : vector<8x64xf32>
    %283 = arith.divf %281, %282 : vector<8x64xf32>
    %284 = arith.mulf %275, %258 : vector<8x64xf32>
    %285 = arith.mulf %269, %277 : vector<8x64xf32>
    %286 = arith.addf %284, %285 : vector<8x64xf32>
    %287 = math.tanh %286 : vector<8x64xf32>
    %288 = arith.mulf %283, %287 : vector<8x64xf32>
    %289 = vector.extract_strided_slice %5 {offsets = [80, 0], sizes = [8, 256], strides = [1, 1]} : vector<96x256xf32> to vector<8x256xf32>
    %cst_49 = arith.constant dense<0.000000e+00> : vector<8x256xf32>
    %290 = tpu.matmul %288, %6, %cst_49 {dimension_numbers = #tpu.dot_dimension_numbers<[1], [0], [0], [1], [0, 0, 1, 1], [], []>} : vector<8x64xf32>, vector<64x256xf32>, vector<8x256xf32> -> vector<8x256xf32>
    %291 = arith.addf %289, %290 : vector<8x256xf32>
    %292 = vector.extract_strided_slice %291 {offsets = [0, 0], sizes = [8, 64], strides = [1, 1]} : vector<8x256xf32> to vector<8x64xf32>
    %293 = arith.negf %292 : vector<8x64xf32>
    %294 = math.exp %293 : vector<8x64xf32>
    %cst_50 = arith.constant 1.000000e+00 : f32
    %295 = vector.broadcast %cst_50 : f32 to vector<8x64xf32>
    %296 = arith.addf %295, %294 : vector<8x64xf32>
    %297 = arith.divf %295, %296 : vector<8x64xf32>
    %298 = vector.extract_strided_slice %291 {offsets = [0, 64], sizes = [8, 64], strides = [1, 1]} : vector<8x256xf32> to vector<8x64xf32>
    %299 = arith.negf %298 : vector<8x64xf32>
    %300 = math.exp %299 : vector<8x64xf32>
    %cst_51 = arith.constant 1.000000e+00 : f32
    %301 = vector.broadcast %cst_51 : f32 to vector<8x64xf32>
    %302 = arith.addf %301, %300 : vector<8x64xf32>
    %303 = arith.divf %301, %302 : vector<8x64xf32>
    %304 = vector.extract_strided_slice %291 {offsets = [0, 128], sizes = [8, 64], strides = [1, 1]} : vector<8x256xf32> to vector<8x64xf32>
    %305 = math.tanh %304 : vector<8x64xf32>
    %306 = vector.extract_strided_slice %291 {offsets = [0, 192], sizes = [8, 64], strides = [1, 1]} : vector<8x256xf32> to vector<8x64xf32>
    %307 = arith.negf %306 : vector<8x64xf32>
    %308 = math.exp %307 : vector<8x64xf32>
    %cst_52 = arith.constant 1.000000e+00 : f32
    %309 = vector.broadcast %cst_52 : f32 to vector<8x64xf32>
    %310 = arith.addf %309, %308 : vector<8x64xf32>
    %311 = arith.divf %309, %310 : vector<8x64xf32>
    %312 = arith.mulf %303, %286 : vector<8x64xf32>
    %313 = arith.mulf %297, %305 : vector<8x64xf32>
    %314 = arith.addf %312, %313 : vector<8x64xf32>
    %315 = math.tanh %314 : vector<8x64xf32>
    %316 = arith.mulf %311, %315 : vector<8x64xf32>
    %317 = vector.extract_strided_slice %5 {offsets = [88, 0], sizes = [8, 256], strides = [1, 1]} : vector<96x256xf32> to vector<8x256xf32>
    %cst_53 = arith.constant dense<0.000000e+00> : vector<8x256xf32>
    %318 = tpu.matmul %316, %6, %cst_53 {dimension_numbers = #tpu.dot_dimension_numbers<[1], [0], [0], [1], [0, 0, 1, 1], [], []>} : vector<8x64xf32>, vector<64x256xf32>, vector<8x256xf32> -> vector<8x256xf32>
    %319 = arith.addf %317, %318 : vector<8x256xf32>
    %320 = vector.extract_strided_slice %319 {offsets = [0, 0], sizes = [8, 64], strides = [1, 1]} : vector<8x256xf32> to vector<8x64xf32>
    %321 = arith.negf %320 : vector<8x64xf32>
    %322 = math.exp %321 : vector<8x64xf32>
    %cst_54 = arith.constant 1.000000e+00 : f32
    %323 = vector.broadcast %cst_54 : f32 to vector<8x64xf32>
    %324 = arith.addf %323, %322 : vector<8x64xf32>
    %325 = arith.divf %323, %324 : vector<8x64xf32>
    %326 = vector.extract_strided_slice %319 {offsets = [0, 64], sizes = [8, 64], strides = [1, 1]} : vector<8x256xf32> to vector<8x64xf32>
    %327 = arith.negf %326 : vector<8x64xf32>
    %328 = math.exp %327 : vector<8x64xf32>
    %cst_55 = arith.constant 1.000000e+00 : f32
    %329 = vector.broadcast %cst_55 : f32 to vector<8x64xf32>
    %330 = arith.addf %329, %328 : vector<8x64xf32>
    %331 = arith.divf %329, %330 : vector<8x64xf32>
    %332 = vector.extract_strided_slice %319 {offsets = [0, 128], sizes = [8, 64], strides = [1, 1]} : vector<8x256xf32> to vector<8x64xf32>
    %333 = math.tanh %332 : vector<8x64xf32>
    %334 = vector.extract_strided_slice %319 {offsets = [0, 192], sizes = [8, 64], strides = [1, 1]} : vector<8x256xf32> to vector<8x64xf32>
    %335 = arith.negf %334 : vector<8x64xf32>
    %336 = math.exp %335 : vector<8x64xf32>
    %cst_56 = arith.constant 1.000000e+00 : f32
    %337 = vector.broadcast %cst_56 : f32 to vector<8x64xf32>
    %338 = arith.addf %337, %336 : vector<8x64xf32>
    %339 = arith.divf %337, %338 : vector<8x64xf32>
    %340 = arith.mulf %331, %314 : vector<8x64xf32>
    %341 = arith.mulf %325, %333 : vector<8x64xf32>
    %342 = arith.addf %340, %341 : vector<8x64xf32>
    %343 = math.tanh %342 : vector<8x64xf32>
    %344 = arith.mulf %339, %343 : vector<8x64xf32>
    %c0_57 = arith.constant 0 : index
    %c0_58 = arith.constant 0 : index
    %345 = vector.load %arg5[%c0_57, %c0_58] : memref<64x4xf32, #tpu.memory_space<vmem>>, vector<64x4xf32>
    %cst_59 = arith.constant dense<0.000000e+00> : vector<8x4xf32>
    %346 = tpu.matmul %344, %345, %cst_59 {dimension_numbers = #tpu.dot_dimension_numbers<[1], [0], [0], [1], [0, 0, 1, 1], [], []>} : vector<8x64xf32>, vector<64x4xf32>, vector<8x4xf32> -> vector<8x4xf32>
    %c0_60 = arith.constant 0 : index
    %c0_61 = arith.constant 0 : index
    %347 = vector.load %arg6[%c0_60, %c0_61] : memref<1x4xf32, #tpu.memory_space<vmem>>, vector<1x4xf32>
    %348 = vector.broadcast %347 : vector<1x4xf32> to vector<8x4xf32>
    %349 = arith.addf %346, %348 : vector<8x4xf32>
    %c0_62 = arith.constant 0 : index
    %c0_63 = arith.constant 0 : index
    %350 = vector.load %arg7[%c0_62, %c0_63] : memref<8x4xf32, #tpu.memory_space<vmem>>, vector<8x4xf32>
    tpu.vector_store %arg7[%c0_62, %c0_63], %349 {strides = array<i32>} : memref<8x4xf32, #tpu.memory_space<vmem>>, vector<8x4xf32>,
    return
  }
  func.func @transform_0(%arg0: i32) -> (i32, i32) {
    %c0_i32 = arith.constant 0 : i32
    %c0_i32_0 = arith.constant 0 : i32
    %c0_i32_1 = arith.constant 0 : i32
    return %c0_i32, %c0_i32_0 : i32, i32
  }
  func.func @transform_1(%arg0: i32) -> (i32, i32) {
    %c0_i32 = arith.constant 0 : i32
    %c0_i32_0 = arith.constant 0 : i32
    %c0_i32_1 = arith.constant 0 : i32
    return %c0_i32, %c0_i32_0 : i32, i32
  }
  func.func @transform_2(%arg0: i32) -> (i32, i32) {
    %c0_i32 = arith.constant 0 : i32
    %c0_i32_0 = arith.constant 0 : i32
    %c0_i32_1 = arith.constant 0 : i32
    return %c0_i32, %c0_i32_0 : i32, i32
  }
  func.func @transform_3(%arg0: i32) -> (i32, i32) {
    %c0_i32 = arith.constant 0 : i32
    %c0_i32_0 = arith.constant 0 : i32
    %c0_i32_1 = arith.constant 0 : i32
    return %c0_i32, %c0_i32_0 : i32, i32
  }
  func.func @transform_4(%arg0: i32) -> (i32, i32) {
    %c0_i32 = arith.constant 0 : i32
    %c0_i32_0 = arith.constant 0 : i32
    %c0_i32_1 = arith.constant 0 : i32
    return %c0_i32, %c0_i32_0 : i32, i32
  }
  func.func @transform_5(%arg0: i32) -> (i32, i32) {
    %c0_i32 = arith.constant 0 : i32
    %c0_i32_0 = arith.constant 0 : i32
    %c0_i32_1 = arith.constant 0 : i32
    return %c0_i32, %c0_i32_0 : i32, i32
  }
  func.func @transform_6(%arg0: i32) -> (i32, i32) {
    %c0_i32 = arith.constant 0 : i32
    %c0_i32_0 = arith.constant 0 : i32
    %c0_i32_1 = arith.constant 0 : i32
    return %c0_i32, %c0_i32_0 : i32, i32
  }
}

</mosaic_0001>

<llo_original>
// kernel: tpu_custom_call.1
$region0: #{tpu_custom_call.1}
  #allocation0 [shape = 'u32[]', space=smem, size = 0x4, offset = 0x4, fixed_abs, tag = 'smem constant byte address 0x4 - core index']
  #allocation1 [shape = 'u32[144,128]{1,0:T(1,128)}', space=vmem, size = 0x12000, scoped, tag = 'internal scratch']
  %s0 = inlined_call_operand.vmem [shape: f32[96,4], index: 0, kind: input, shape index: {}]
  %s1 = inlined_call_operand.vmem [shape: f32[4,256], index: 1, kind: input, shape index: {}]
  %s2 = inlined_call_operand.vmem [shape: f32[64,256], index: 2, kind: input, shape index: {}]
  %s3 = inlined_call_operand.vmem [shape: f32[1,256], index: 3, kind: input, shape index: {}]
  %s4 = inlined_call_operand.vmem [shape: f32[64,4], index: 4, kind: input, shape index: {}]
  %s5 = inlined_call_operand.vmem [shape: f32[1,4], index: 5, kind: input, shape index: {}]
  %s6 = inlined_call_operand.vmem [shape: f32[8,4], index: 6, kind: output, shape index: {}]
  %s7 = sld [smem:[#allocation0]]
  $region34: #{tpu_custom_call.1} parent=0
    _
  %s9 = ssub.s32 1, %s7
  %s10 = scalar_select 0, %s9, %s7
  // Predicated region
  $region2: #{tpu_custom_call.1} parent=0 // pred_check
    _
  $region3: #{tpu_custom_call.1} parent=0 // pred_check_branch
    %12 = sbr.rel (0) target = $region5
  $region4: #{tpu_custom_call.1} parent=0 // pred_region
    _
  $region5: #{tpu_custom_call.1} parent=0 // pred_fallthru
    _
  // Predicated region
  $region6: #{tpu_custom_call.1} parent=0 // pred_check
    _
  $region7: #{tpu_custom_call.1} parent=0 // pred_check_branch
    %14 = sbr.rel (0) target = $region9
  $region8: #{tpu_custom_call.1} parent=0 // pred_region
    _
  $region9: #{tpu_custom_call.1} parent=0 // pred_fallthru
    _
  // Predicated region
  $region10: #{tpu_custom_call.1} parent=0 // pred_check
    _
  $region11: #{tpu_custom_call.1} parent=0 // pred_check_branch
    %16 = sbr.rel (0) target = $region13
  $region12: #{tpu_custom_call.1} parent=0 // pred_region
    _
  $region13: #{tpu_custom_call.1} parent=0 // pred_fallthru
    _
  // Predicated region
  $region14: #{tpu_custom_call.1} parent=0 // pred_check
    _
  $region15: #{tpu_custom_call.1} parent=0 // pred_check_branch
    %18 = sbr.rel (0) target = $region17
  $region16: #{tpu_custom_call.1} parent=0 // pred_region
    _
  $region17: #{tpu_custom_call.1} parent=0 // pred_fallthru
    _
  // Predicated region
  $region18: #{tpu_custom_call.1} parent=0 // pred_check
    _
  $region19: #{tpu_custom_call.1} parent=0 // pred_check_branch
    %20 = sbr.rel (0) target = $region21
  $region20: #{tpu_custom_call.1} parent=0 // pred_region
    _
  $region21: #{tpu_custom_call.1} parent=0 // pred_fallthru
    _
  // Predicated region
  $region22: #{tpu_custom_call.1} parent=0 // pred_check
    _
  $region23: #{tpu_custom_call.1} parent=0 // pred_check_branch
    %22 = sbr.rel (0) target = $region25
  $region24: #{tpu_custom_call.1} parent=0 // pred_region
    _
  $region25: #{tpu_custom_call.1} parent=0 // pred_fallthru
    _
  %v23 = vld [vmem:[%s0] sm:$0xff]
  %v24 = vld [vmem:[%s0 + $0x8] sm:$0xff]
  %v25 = vld [vmem:[%s0 + $0x10] sm:$0xff]
  %v26 = vld [vmem:[%s0 + $0x18] sm:$0xff]
  %v27 = vld [vmem:[%s0 + $0x20] sm:$0xff]
  %v28 = vld [vmem:[%s0 + $0x28] sm:$0xff]
  %v29 = vld [vmem:[%s0 + $0x30] sm:$0xff]
  %v30 = vld [vmem:[%s0 + $0x38] sm:$0xff]
  %v31 = vld [vmem:[%s0 + $0x40] sm:$0xff]
  %v32 = vld [vmem:[%s0 + $0x48] sm:$0xff]
  %v33 = vld [vmem:[%s0 + $0x50] sm:$0xff]
  %v34 = vld [vmem:[%s0 + $0x58] sm:$0xff]
  %v35 = vld [vmem:[%s1] sm:$0xff]
  %v36 = vld [vmem:[%s3] sm:$0x3]
  %v38 = vlaneseq
  %v39 = vshrl.u32 %v38, 7
  %v40 = vsub.s32 0, %v39
  %v41 = vrot.slane %v36, %v40
  %v42 = vlaneseq
  %v43 = vshrl.u32 %v42, 7
  %v44 = vsub.s32 1, %v43
  %v45 = vrot.slane %v36, %v44
  %v49 = vcombine.high %v35, %v35
  %vm50 = vcmask 31744
  %v52 = vsel %vm50, %v23, 0
  %v55 = vsel %vm50, %v24, 0
  %v58 = vsel %vm50, %v25, 0
  %v61 = vsel %vm50, %v26, 0
  %v64 = vsel %vm50, %v27, 0
  %v67 = vsel %vm50, %v28, 0
  %v70 = vsel %vm50, %v29, 0
  %v73 = vsel %vm50, %v30, 0
  %v76 = vsel %vm50, %v31, 0
  %v79 = vsel %vm50, %v32, 0
  %v82 = vsel %vm50, %v33, 0
  %v85 = vsel %vm50, %v34, 0
  %vm87 = vcmask 1043456
  %v88 = vsel %vm87, %v35, 0
  %v90 = vsel %vm87, %v49, 0
  %92 = vmatprep.subr.mxu0 %v90
  %93 = vmatpush1.msra.mxu0 %v88
  %94 = vmatprep.subr.mxu0 0.0
  %95 = vmatpush1.msra.mxu0 0.0
  %96 = vmatprep.subr.mxu0 0.0
  %97 = vmatpush1.msra.mxu0 0.0
  %98 = vmatprep.subr.mxu0 0.0
  %99 = vmatpush1.msra.mxu0 0.0
  %100 = vmatprep.subr.mxu0 0.0
  %101 = vmatpush1.msra.mxu0 0.0
  %102 = vmatprep.subr.mxu0 0.0
  %103 = vmatpush1.msra.mxu0 0.0
  %104 = vmatprep.subr.mxu0 0.0
  %105 = vmatpush1.msra.mxu0 0.0
  %106 = vmatprep.subr.mxu0 0.0
  %107 = vmatpush1.msra.mxu0 0.0
  %108 = vmatprep.subr.mxu0 0.0
  %109 = vmatpush1.msra.mxu0 0.0
  %110 = vmatprep.subr.mxu0 0.0
  %111 = vmatpush1.msra.mxu0 0.0
  %112 = vmatprep.subr.mxu0 0.0
  %113 = vmatpush1.msra.mxu0 0.0
  %114 = vmatprep.subr.mxu0 0.0
  %115 = vmatpush1.msra.mxu0 0.0
  %116 = vmatprep.subr.mxu0 0.0
  %117 = vmatpush1.msra.mxu0 0.0
  %118 = vmatprep.subr.mxu0 0.0
  %119 = vmatpush1.msra.mxu0 0.0
  %120 = vmatprep.subr.mxu0 0.0
  %121 = vmatpush1.msra.mxu0 0.0
  %122 = vmatprep.subr.mxu0 0.0
  %123 = vmatpush1.msra.mxu0 0.0
  %124 = vmatprep.subr.mxu0 0.0
  %125 = vmatpush1.msra.mxu0 0.0
  %126 = vmatprep.subr.mxu0 0.0
  %127 = vmatpush1.msra.mxu0 0.0
  %128 = vmatprep.subr.mxu0 0.0
  %129 = vmatpush1.msra.mxu0 0.0
  %130 = vmatprep.subr.mxu0 0.0
  %131 = vmatpush1.msra.mxu0 0.0
  %132 = vmatprep.subr.mxu0 0.0
  %133 = vmatpush1.msra.mxu0 0.0
  %134 = vmatprep.subr.mxu0 0.0
  %135 = vmatpush1.msra.mxu0 0.0
  %136 = vmatprep.subr.mxu0 0.0
  %137 = vmatpush1.msra.mxu0 0.0
  %138 = vmatprep.subr.mxu0 0.0
  %139 = vmatpush1.msra.mxu0 0.0
  %140 = vmatprep.subr.mxu0 0.0
  %141 = vmatpush1.msra.mxu0 0.0
  %142 = vmatprep.subr.mxu0 0.0
  %143 = vmatpush1.msra.mxu0 0.0
  %144 = vmatprep.subr.mxu0 0.0
  %145 = vmatpush1.msra.mxu0 0.0
  %146 = vmatprep.subr.mxu0 0.0
  %147 = vmatpush1.msra.mxu0 0.0
  %148 = vmatprep.subr.mxu0 0.0
  %149 = vmatpush1.msra.mxu0 0.0
  %150 = vmatprep.subr.mxu0 0.0
  %151 = vmatpush1.msra.mxu0 0.0
  %152 = vmatprep.subr.mxu0 0.0
  %153 = vmatpush1.msra.mxu0 0.0
  %154 = vmatprep.subr.mxu0 0.0
  %155 = vmatpush1.msra.mxu0 0.0
  %156 = vmatprep.mubr.f32.mxu0 0.0
  %157 = vmatmul.mubr.f32.gmra.mrb[0].mxu0 %v52
  %v158 = vpop.f32.mrb[0].mxu0
  %v159 = vadd.f32 %v41, %v158
  %v160 = vpop.f32.mrb[0].mxu0
  %v161 = vadd.f32 %v45, %v160
  %162 = vmatprep.mubr.f32.mxu0 0.0
  %163 = vmatmul.mubr.f32.gmra.mrb[0].mxu0 %v55
  %v164 = vpop.f32.mrb[0].mxu0
  %v165 = vadd.f32 %v41, %v164
  %v166 = vpop.f32.mrb[0].mxu0
  %v167 = vadd.f32 %v45, %v166
  %168 = vmatprep.mubr.f32.mxu0 0.0
  %169 = vmatmul.mubr.f32.gmra.mrb[0].mxu0 %v58
  %v170 = vpop.f32.mrb[0].mxu0
  %v171 = vadd.f32 %v41, %v170
  %v172 = vpop.f32.mrb[0].mxu0
  %v173 = vadd.f32 %v45, %v172
  %174 = vmatprep.mubr.f32.mxu0 0.0
  %175 = vmatmul.mubr.f32.gmra.mrb[0].mxu0 %v61
  %v176 = vpop.f32.mrb[0].mxu0
  %v177 = vadd.f32 %v41, %v176
  %v178 = vpop.f32.mrb[0].mxu0
  %v179 = vadd.f32 %v45, %v178
  %180 = vmatprep.mubr.f32.mxu0 0.0
  %181 = vmatmul.mubr.f32.gmra.mrb[0].mxu0 %v64
  %v182 = vpop.f32.mrb[0].mxu0
  %v183 = vadd.f32 %v41, %v182
  %v184 = vpop.f32.mrb[0].mxu0
  %v185 = vadd.f32 %v45, %v184
  %186 = vmatprep.mubr.f32.mxu0 0.0
  %187 = vmatmul.mubr.f32.gmra.mrb[0].mxu0 %v67
  %v188 = vpop.f32.mrb[0].mxu0
  %v189 = vadd.f32 %v41, %v188
  %v190 = vpop.f32.mrb[0].mxu0
  %v191 = vadd.f32 %v45, %v190
  %192 = vmatprep.mubr.f32.mxu0 0.0
  %193 = vmatmul.mubr.f32.gmra.mrb[0].mxu0 %v70
  %v194 = vpop.f32.mrb[0].mxu0
  %v195 = vadd.f32 %v41, %v194
  %v196 = vpop.f32.mrb[0].mxu0
  %v197 = vadd.f32 %v45, %v196
  %198 = vmatprep.mubr.f32.mxu0 0.0
  %199 = vmatmul.mubr.f32.gmra.mrb[0].mxu0 %v73
  %v200 = vpop.f32.mrb[0].mxu0
  %v201 = vadd.f32 %v41, %v200
  %v202 = vpop.f32.mrb[0].mxu0
  %v203 = vadd.f32 %v45, %v202
  %204 = vmatprep.mubr.f32.mxu0 0.0
  %205 = vmatmul.mubr.f32.gmra.mrb[0].mxu0 %v76
  %v206 = vpop.f32.mrb[0].mxu0
  %v207 = vadd.f32 %v41, %v206
  %v208 = vpop.f32.mrb[0].mxu0
  %v209 = vadd.f32 %v45, %v208
  %210 = vmatprep.mubr.f32.mxu0 0.0
  %211 = vmatmul.mubr.f32.gmra.mrb[0].mxu0 %v79
  %v212 = vpop.f32.mrb[0].mxu0
  %v213 = vadd.f32 %v41, %v212
  %v214 = vpop.f32.mrb[0].mxu0
  %v215 = vadd.f32 %v45, %v214
  %216 = vmatprep.mubr.f32.mxu0 0.0
  %217 = vmatmul.mubr.f32.gmra.mrb[0].mxu0 %v82
  %v218 = vpop.f32.mrb[0].mxu0
  %v219 = vadd.f32 %v41, %v218
  %v220 = vpop.f32.mrb[0].mxu0
  %v221 = vadd.f32 %v45, %v220
  %222 = vmatprep.mubr.f32.mxu0 0.0
  %223 = vmatmul.mubr.f32.gmra.mrb[0].mxu0 %v85
  %v224 = vpop.f32.mrb[0].mxu0
  %v225 = vadd.f32 %v41, %v224
  %v226 = vpop.f32.mrb[0].mxu0
  %v227 = vadd.f32 %v45, %v226
  %228 = vdwg.mxu0
  %v229 = vld [vmem:[%s2] sm:$0xff]
  %v230 = vld [vmem:[%s2 + $0x8] sm:$0xff]
  %v231 = vld [vmem:[%s2 + $0x10] sm:$0xff]
  %v232 = vld [vmem:[%s2 + $0x18] sm:$0xff]
  %v233 = vld [vmem:[%s2 + $0x20] sm:$0xff]
  %v234 = vld [vmem:[%s2 + $0x28] sm:$0xff]
  %v235 = vld [vmem:[%s2 + $0x30] sm:$0xff]
  %v236 = vld [vmem:[%s2 + $0x38] sm:$0xff]
  %v237 = vld [vmem:[%s2 + $0x40] sm:$0xff]
  %v238 = vld [vmem:[%s2 + $0x48] sm:$0xff]
  %v239 = vld [vmem:[%s2 + $0x50] sm:$0xff]
  %v240 = vld [vmem:[%s2 + $0x58] sm:$0xff]
  %v241 = vld [vmem:[%s2 + $0x60] sm:$0xff]
  %v242 = vld [vmem:[%s2 + $0x68] sm:$0xff]
  %v243 = vld [vmem:[%s2 + $0x70] sm:$0xff]
  %v244 = vld [vmem:[%s2 + $0x78] sm:$0xff]
  %vm245 = vcmask 523264
  %v247 = vsel %vm245, 0.0, 0
  %249 = vmatprep.subr.mxu0 %v230
  %250 = vmatpush1.msra.mxu0 %v229
  %251 = vmatprep.subr.mxu0 %v232
  %252 = vmatpush1.msra.mxu0 %v231
  %253 = vmatprep.subr.mxu0 %v234
  %254 = vmatpush1.msra.mxu0 %v233
  %255 = vmatprep.subr.mxu0 %v236
  %256 = vmatpush1.msra.mxu0 %v235
  %257 = vmatprep.subr.mxu0 %v238
  %258 = vmatpush1.msra.mxu0 %v237
  %259 = vmatprep.subr.mxu0 %v240
  %260 = vmatpush1.msra.mxu0 %v239
  %261 = vmatprep.subr.mxu0 %v242
  %262 = vmatpush1.msra.mxu0 %v241
  %263 = vmatprep.subr.mxu0 %v244
  %264 = vmatpush1.msra.mxu0 %v243
  %265 = vmatprep.subr.mxu0 0.0
  %266 = vmatpush1.msra.mxu0 0.0
  %267 = vmatprep.subr.mxu0 0.0
  %268 = vmatpush1.msra.mxu0 0.0
  %269 = vmatprep.subr.mxu0 0.0
  %270 = vmatpush1.msra.mxu0 0.0
  %271 = vmatprep.subr.mxu0 0.0
  %272 = vmatpush1.msra.mxu0 0.0
  %273 = vmatprep.subr.mxu0 0.0
  %274 = vmatpush1.msra.mxu0 0.0
  %275 = vmatprep.subr.mxu0 0.0
  %276 = vmatpush1.msra.mxu0 0.0
  %277 = vmatprep.subr.mxu0 0.0
  %278 = vmatpush1.msra.mxu0 0.0
  %279 = vmatprep.subr.mxu0 0.0
  %280 = vmatpush1.msra.mxu0 0.0
  %281 = vmatprep.subr.mxu0 0.0
  %282 = vmatpush1.msra.mxu0 0.0
  %283 = vmatprep.subr.mxu0 0.0
  %284 = vmatpush1.msra.mxu0 0.0
  %285 = vmatprep.subr.mxu0 0.0
  %286 = vmatpush1.msra.mxu0 0.0
  %287 = vmatprep.subr.mxu0 0.0
  %288 = vmatpush1.msra.mxu0 0.0
  %289 = vmatprep.subr.mxu0 0.0
  %290 = vmatpush1.msra.mxu0 0.0
  %291 = vmatprep.subr.mxu0 0.0
  %292 = vmatpush1.msra.mxu0 0.0
  %293 = vmatprep.subr.mxu0 0.0
  %294 = vmatpush1.msra.mxu0 0.0
  %295 = vmatprep.subr.mxu0 0.0
  %296 = vmatpush1.msra.mxu0 0.0
  %297 = vmatprep.subr.mxu0 0.0
  %298 = vmatpush1.msra.mxu0 0.0
  %299 = vmatprep.subr.mxu0 0.0
  %300 = vmatpush1.msra.mxu0 0.0
  %301 = vmatprep.subr.mxu0 0.0
  %302 = vmatpush1.msra.mxu0 0.0
  %303 = vmatprep.subr.mxu0 0.0
  %304 = vmatpush1.msra.mxu0 0.0
  %305 = vmatprep.subr.mxu0 0.0
  %306 = vmatpush1.msra.mxu0 0.0
  %307 = vmatprep.subr.mxu0 0.0
  %308 = vmatpush1.msra.mxu0 0.0
  %309 = vmatprep.subr.mxu0 0.0
  %310 = vmatpush1.msra.mxu0 0.0
  %311 = vmatprep.subr.mxu0 0.0
  %312 = vmatpush1.msra.mxu0 0.0
  %313 = vmatprep.mubr.f32.mxu0 0.0
  %314 = vmatmul.mubr.f32.gmra.mrb[0].mxu0 %v247
  %v315 = vpop.f32.mrb[0].mxu0
  %v316 = vadd.f32 0.0, %v315
  %v317 = vpop.f32.mrb[0].mxu0
  %v318 = vadd.f32 0.0, %v317
  %319 = vdwg.mxu0
  %v320 = vadd.f32 %v159, %v316
  %v321 = vadd.f32 %v161, %v318
  %v322 = vxor.u32 %v320, 2147483648
  %v323 = vmul.f32 %v322, 1.442695
  %v324 = vpow.pop %v323
  %v325 = vadd.f32 %v324, 1.0
  %v326 = vrcp.pop %v325
  %v327 = vmul.f32 1.0, %v326
  %v328 = vtanh.pop %v321
  %v329 = vxor.u32 %v321, 2147483648
  %v330 = vmul.f32 %v329, 1.442695
  %v331 = vpow.pop %v330
  %v332 = vadd.f32 %v331, 1.0
  %v333 = vrcp.pop %v332
  %v334 = vmul.f32 1.0, %v333
  %v335 = vmul.f32 %v327, 0.0
  %v336 = vmul.f32 %v327, %v328
  %338 = vrot.lane.b32.xlu0 %v336, 64
  %v339 = vpop.permute.xlu0 %338
  %v341 = vadd.f32 %v335, %v339
  %v342 = vtanh.pop %v341
  %v343 = vmul.f32 %v334, %v342
  %345 = vrot.lane.b32.xlu0 %v343, 64
  %v346 = vpop.permute.xlu0 %345
  %v347 = vsel %vm245, %v346, 0
  %349 = vmatprep.subr.mxu0 %v230
  %350 = vmatpush1.msra.mxu0 %v229
  %351 = vmatprep.subr.mxu0 %v232
  %352 = vmatpush1.msra.mxu0 %v231
  %353 = vmatprep.subr.mxu0 %v234
  %354 = vmatpush1.msra.mxu0 %v233
  %355 = vmatprep.subr.mxu0 %v236
  %356 = vmatpush1.msra.mxu0 %v235
  %357 = vmatprep.subr.mxu0 %v238
  %358 = vmatpush1.msra.mxu0 %v237
  %359 = vmatprep.subr.mxu0 %v240
  %360 = vmatpush1.msra.mxu0 %v239
  %361 = vmatprep.subr.mxu0 %v242
  %362 = vmatpush1.msra.mxu0 %v241
  %363 = vmatprep.subr.mxu0 %v244
  %364 = vmatpush1.msra.mxu0 %v243
  %365 = vmatprep.subr.mxu0 0.0
  %366 = vmatpush1.msra.mxu0 0.0
  %367 = vmatprep.subr.mxu0 0.0
  %368 = vmatpush1.msra.mxu0 0.0
  %369 = vmatprep.subr.mxu0 0.0
  %370 = vmatpush1.msra.mxu0 0.0
  %371 = vmatprep.subr.mxu0 0.0
  %372 = vmatpush1.msra.mxu0 0.0
  %373 = vmatprep.subr.mxu0 0.0
  %374 = vmatpush1.msra.mxu0 0.0
  %375 = vmatprep.subr.mxu0 0.0
  %376 = vmatpush1.msra.mxu0 0.0
  %377 = vmatprep.subr.mxu0 0.0
  %378 = vmatpush1.msra.mxu0 0.0
  %379 = vmatprep.subr.mxu0 0.0
  %380 = vmatpush1.msra.mxu0 0.0
  %381 = vmatprep.subr.mxu0 0.0
  %382 = vmatpush1.msra.mxu0 0.0
  %383 = vmatprep.subr.mxu0 0.0
  %384 = vmatpush1.msra.mxu0 0.0
  %385 = vmatprep.subr.mxu0 0.0
  %386 = vmatpush1.msra.mxu0 0.0
  %387 = vmatprep.subr.mxu0 0.0
  %388 = vmatpush1.msra.mxu0 0.0
  %389 = vmatprep.subr.mxu0 0.0
  %390 = vmatpush1.msra.mxu0 0.0
  %391 = vmatprep.subr.mxu0 0.0
  %392 = vmatpush1.msra.mxu0 0.0
  %393 = vmatprep.subr.mxu0 0.0
  %394 = vmatpush1.msra.mxu0 0.0
  %395 = vmatprep.subr.mxu0 0.0
  %396 = vmatpush1.msra.mxu0 0.0
  %397 = vmatprep.subr.mxu0 0.0
  %398 = vmatpush1.msra.mxu0 0.0
  %399 = vmatprep.subr.mxu0 0.0
  %400 = vmatpush1.msra.mxu0 0.0
  %401 = vmatprep.subr.mxu0 0.0
  %402 = vmatpush1.msra.mxu0 0.0
  %403 = vmatprep.subr.mxu0 0.0
  %404 = vmatpush1.msra.mxu0 0.0
  %405 = vmatprep.subr.mxu0 0.0
  %406 = vmatpush1.msra.mxu0 0.0
  %407 = vmatprep.subr.mxu0 0.0
  %408 = vmatpush1.msra.mxu0 0.0
  %409 = vmatprep.subr.mxu0 0.0
  %410 = vmatpush1.msra.mxu0 0.0
  %411 = vmatprep.subr.mxu0 0.0
  %412 = vmatpush1.msra.mxu0 0.0
  %413 = vmatprep.mubr.f32.mxu0 0.0
  %414 = vmatmul.mubr.f32.gmra.mrb[0].mxu0 %v347
  %v415 = vpop.f32.mrb[0].mxu0
  %v416 = vadd.f32 0.0, %v415
  %v417 = vpop.f32.mrb[0].mxu0
  %v418 = vadd.f32 0.0, %v417
  %419 = vdwg.mxu0
  %v420 = vadd.f32 %v165, %v416
  %v421 = vadd.f32 %v167, %v418
  %v422 = vxor.u32 %v420, 2147483648
  %v423 = vmul.f32 %v422, 1.442695
  %v424 = vpow.pop %v423
  %v425 = vadd.f32 %v424, 1.0
  %v426 = vrcp.pop %v425
  %v427 = vmul.f32 1.0, %v426
  %v428 = vtanh.pop %v421
  %v429 = vxor.u32 %v421, 2147483648
  %v430 = vmul.f32 %v429, 1.442695
  %v431 = vpow.pop %v430
  %v432 = vadd.f32 %v431, 1.0
  %v433 = vrcp.pop %v432
  %v434 = vmul.f32 1.0, %v433
  %v435 = vmul.f32 %v427, %v341
  %v436 = vmul.f32 %v427, %v428
  %438 = vrot.lane.b32.xlu0 %v436, 64
  %v439 = vpop.permute.xlu0 %438
  %v441 = vadd.f32 %v435, %v439
  %v442 = vtanh.pop %v441
  %v443 = vmul.f32 %v434, %v442
  %445 = vrot.lane.b32.xlu0 %v443, 64
  %v446 = vpop.permute.xlu0 %445
  %v447 = vsel %vm245, %v446, 0
  %449 = vmatprep.subr.mxu0 %v230
  %450 = vmatpush1.msra.mxu0 %v229
  %451 = vmatprep.subr.mxu0 %v232
  %452 = vmatpush1.msra.mxu0 %v231
  %453 = vmatprep.subr.mxu0 %v234
  %454 = vmatpush1.msra.mxu0 %v233
  %455 = vmatprep.subr.mxu0 %v236
  %456 = vmatpush1.msra.mxu0 %v235
  %457 = vmatprep.subr.mxu0 %v238
  %458 = vmatpush1.msra.mxu0 %v237
  %459 = vmatprep.subr.mxu0 %v240
  %460 = vmatpush1.msra.mxu0 %v239
  %461 = vmatprep.subr.mxu0 %v242
  %462 = vmatpush1.msra.mxu0 %v241
  %463 = vmatprep.subr.mxu0 %v244
  %464 = vmatpush1.msra.mxu0 %v243
  %465 = vmatprep.subr.mxu0 0.0
  %466 = vmatpush1.msra.mxu0 0.0
  %467 = vmatprep.subr.mxu0 0.0
  %468 = vmatpush1.msra.mxu0 0.0
  %469 = vmatprep.subr.mxu0 0.0
  %470 = vmatpush1.msra.mxu0 0.0
  %471 = vmatprep.subr.mxu0 0.0
  %472 = vmatpush1.msra.mxu0 0.0
  %473 = vmatprep.subr.mxu0 0.0
  %474 = vmatpush1.msra.mxu0 0.0
  %475 = vmatprep.subr.mxu0 0.0
  %476 = vmatpush1.msra.mxu0 0.0
  %477 = vmatprep.subr.mxu0 0.0
  %478 = vmatpush1.msra.mxu0 0.0
  %479 = vmatprep.subr.mxu0 0.0
  %480 = vmatpush1.msra.mxu0 0.0
  %481 = vmatprep.subr.mxu0 0.0
  %482 = vmatpush1.msra.mxu0 0.0
  %483 = vmatprep.subr.mxu0 0.0
  %484 = vmatpush1.msra.mxu0 0.0
  %485 = vmatprep.subr.mxu0 0.0
  %486 = vmatpush1.msra.mxu0 0.0
  %487 = vmatprep.subr.mxu0 0.0
  %488 = vmatpush1.msra.mxu0 0.0
  %489 = vmatprep.subr.mxu0 0.0
  %490 = vmatpush1.msra.mxu0 0.0
  %491 = vmatprep.subr.mxu0 0.0
  %492 = vmatpush1.msra.mxu0 0.0
  %493 = vmatprep.subr.mxu0 0.0
  %494 = vmatpush1.msra.mxu0 0.0
  %495 = vmatprep.subr.mxu0 0.0
  %496 = vmatpush1.msra.mxu0 0.0
  %497 = vmatprep.subr.mxu0 0.0
  %498 = vmatpush1.msra.mxu0 0.0
  %499 = vmatprep.subr.mxu0 0.0
  %500 = vmatpush1.msra.mxu0 0.0
  %501 = vmatprep.subr.mxu0 0.0
  %502 = vmatpush1.msra.mxu0 0.0
  %503 = vmatprep.subr.mxu0 0.0
  %504 = vmatpush1.msra.mxu0 0.0
  %505 = vmatprep.subr.mxu0 0.0
  %506 = vmatpush1.msra.mxu0 0.0
  %507 = vmatprep.subr.mxu0 0.0
  %508 = vmatpush1.msra.mxu0 0.0
  %509 = vmatprep.subr.mxu0 0.0
  %510 = vmatpush1.msra.mxu0 0.0
  %511 = vmatprep.subr.mxu0 0.0
  %512 = vmatpush1.msra.mxu0 0.0
  %513 = vmatprep.mubr.f32.mxu0 0.0
  %514 = vmatmul.mubr.f32.gmra.mrb[0].mxu0 %v447
  %v515 = vpop.f32.mrb[0].mxu0
  %v516 = vadd.f32 0.0, %v515
  %v517 = vpop.f32.mrb[0].mxu0
  %v518 = vadd.f32 0.0, %v517
  %519 = vdwg.mxu0
  %v520 = vadd.f32 %v171, %v516
  %v521 = vadd.f32 %v173, %v518
  %v522 = vxor.u32 %v520, 2147483648
  %v523 = vmul.f32 %v522, 1.442695
  %v524 = vpow.pop %v523
  %v525 = vadd.f32 %v524, 1.0
  %v526 = vrcp.pop %v525
  %v527 = vmul.f32 1.0, %v526
  %v528 = vtanh.pop %v521
  %v529 = vxor.u32 %v521, 2147483648
  %v530 = vmul.f32 %v529, 1.442695
  %v531 = vpow.pop %v530
  %v532 = vadd.f32 %v531, 1.0
  %v533 = vrcp.pop %v532
  %v534 = vmul.f32 1.0, %v533
  %v535 = vmul.f32 %v527, %v441
  %v536 = vmul.f32 %v527, %v528
  %538 = vrot.lane.b32.xlu0 %v536, 64
  %v539 = vpop.permute.xlu0 %538
  %v541 = vadd.f32 %v535, %v539
  %v542 = vtanh.pop %v541
  %v543 = vmul.f32 %v534, %v542
  %545 = vrot.lane.b32.xlu0 %v543, 64
  %v546 = vpop.permute.xlu0 %545
  %v547 = vsel %vm245, %v546, 0
  %549 = vmatprep.subr.mxu0 %v230
  %550 = vmatpush1.msra.mxu0 %v229
  %551 = vmatprep.subr.mxu0 %v232
  %552 = vmatpush1.msra.mxu0 %v231
  %553 = vmatprep.subr.mxu0 %v234
  %554 = vmatpush1.msra.mxu0 %v233
  %555 = vmatprep.subr.mxu0 %v236
  %556 = vmatpush1.msra.mxu0 %v235
  %557 = vmatprep.subr.mxu0 %v238
  %558 = vmatpush1.msra.mxu0 %v237
  %559 = vmatprep.subr.mxu0 %v240
  %560 = vmatpush1.msra.mxu0 %v239
  %561 = vmatprep.subr.mxu0 %v242
  %562 = vmatpush1.msra.mxu0 %v241
  %563 = vmatprep.subr.mxu0 %v244
  %564 = vmatpush1.msra.mxu0 %v243
  %565 = vmatprep.subr.mxu0 0.0
  %566 = vmatpush1.msra.mxu0 0.0
  %567 = vmatprep.subr.mxu0 0.0
  %568 = vmatpush1.msra.mxu0 0.0
  %569 = vmatprep.subr.mxu0 0.0
  %570 = vmatpush1.msra.mxu0 0.0
  %571 = vmatprep.subr.mxu0 0.0
  %572 = vmatpush1.msra.mxu0 0.0
  %573 = vmatprep.subr.mxu0 0.0
  %574 = vmatpush1.msra.mxu0 0.0
  %575 = vmatprep.subr.mxu0 0.0
  %576 = vmatpush1.msra.mxu0 0.0
  %577 = vmatprep.subr.mxu0 0.0
  %578 = vmatpush1.msra.mxu0 0.0
  %579 = vmatprep.subr.mxu0 0.0
  %580 = vmatpush1.msra.mxu0 0.0
  %581 = vmatprep.subr.mxu0 0.0
  %582 = vmatpush1.msra.mxu0 0.0
  %583 = vmatprep.subr.mxu0 0.0
  %584 = vmatpush1.msra.mxu0 0.0
  %585 = vmatprep.subr.mxu0 0.0
  %586 = vmatpush1.msra.mxu0 0.0
  %587 = vmatprep.subr.mxu0 0.0
  %588 = vmatpush1.msra.mxu0 0.0
  %589 = vmatprep.subr.mxu0 0.0
  %590 = vmatpush1.msra.mxu0 0.0
  %591 = vmatprep.subr.mxu0 0.0
  %592 = vmatpush1.msra.mxu0 0.0
  %593 = vmatprep.subr.mxu0 0.0
  %594 = vmatpush1.msra.mxu0 0.0
  %595 = vmatprep.subr.mxu0 0.0
  %596 = vmatpush1.msra.mxu0 0.0
  %597 = vmatprep.subr.mxu0 0.0
  %598 = vmatpush1.msra.mxu0 0.0
  %599 = vmatprep.subr.mxu0 0.0
  %600 = vmatpush1.msra.mxu0 0.0
  %601 = vmatprep.subr.mxu0 0.0
  %602 = vmatpush1.msra.mxu0 0.0
  %603 = vmatprep.subr.mxu0 0.0
  %604 = vmatpush1.msra.mxu0 0.0
  %605 = vmatprep.subr.mxu0 0.0
  %606 = vmatpush1.msra.mxu0 0.0
  %607 = vmatprep.subr.mxu0 0.0
  %608 = vmatpush1.msra.mxu0 0.0
  %609 = vmatprep.subr.mxu0 0.0
  %610 = vmatpush1.msra.mxu0 0.0
  %611 = vmatprep.subr.mxu0 0.0
  %612 = vmatpush1.msra.mxu0 0.0
  %613 = vmatprep.mubr.f32.mxu0 0.0
  %614 = vmatmul.mubr.f32.gmra.mrb[0].mxu0 %v547
  %v615 = vpop.f32.mrb[0].mxu0
  %v616 = vadd.f32 0.0, %v615
  %v617 = vpop.f32.mrb[0].mxu0
  %v618 = vadd.f32 0.0, %v617
  %619 = vdwg.mxu0
  %v620 = vadd.f32 %v177, %v616
  %v621 = vadd.f32 %v179, %v618
  %v622 = vxor.u32 %v620, 2147483648
  %v623 = vmul.f32 %v622, 1.442695
  %v624 = vpow.pop %v623
  %v625 = vadd.f32 %v624, 1.0
  %v626 = vrcp.pop %v625
  %v627 = vmul.f32 1.0, %v626
  %v628 = vtanh.pop %v621
  %v629 = vxor.u32 %v621, 2147483648
  %v630 = vmul.f32 %v629, 1.442695
  %v631 = vpow.pop %v630
  %v632 = vadd.f32 %v631, 1.0
  %v633 = vrcp.pop %v632
  %v634 = vmul.f32 1.0, %v633
  %v635 = vmul.f32 %v627, %v541
  %v636 = vmul.f32 %v627, %v628
  %638 = vrot.lane.b32.xlu0 %v636, 64
  %v639 = vpop.permute.xlu0 %638
  %v641 = vadd.f32 %v635, %v639
  %v642 = vtanh.pop %v641
  %v643 = vmul.f32 %v634, %v642
  %645 = vrot.lane.b32.xlu0 %v643, 64
  %v646 = vpop.permute.xlu0 %645
  %v647 = vsel %vm245, %v646, 0
  %649 = vmatprep.subr.mxu0 %v230
  %650 = vmatpush1.msra.mxu0 %v229
  %651 = vmatprep.subr.mxu0 %v232
  %652 = vmatpush1.msra.mxu0 %v231
  %653 = vmatprep.subr.mxu0 %v234
  %654 = vmatpush1.msra.mxu0 %v233
  %655 = vmatprep.subr.mxu0 %v236
  %656 = vmatpush1.msra.mxu0 %v235
  %657 = vmatprep.subr.mxu0 %v238
  %658 = vmatpush1.msra.mxu0 %v237
  %659 = vmatprep.subr.mxu0 %v240
  %660 = vmatpush1.msra.mxu0 %v239
  %661 = vmatprep.subr.mxu0 %v242
  %662 = vmatpush1.msra.mxu0 %v241
  %663 = vmatprep.subr.mxu0 %v244
  %664 = vmatpush1.msra.mxu0 %v243
  %665 = vmatprep.subr.mxu0 0.0
  %666 = vmatpush1.msra.mxu0 0.0
  %667 = vmatprep.subr.mxu0 0.0
  %668 = vmatpush1.msra.mxu0 0.0
  %669 = vmatprep.subr.mxu0 0.0
  %670 = vmatpush1.msra.mxu0 0.0
  %671 = vmatprep.subr.mxu0 0.0
  %672 = vmatpush1.msra.mxu0 0.0
  %673 = vmatprep.subr.mxu0 0.0
  %674 = vmatpush1.msra.mxu0 0.0
  %675 = vmatprep.subr.mxu0 0.0
  %676 = vmatpush1.msra.mxu0 0.0
  %677 = vmatprep.subr.mxu0 0.0
  %678 = vmatpush1.msra.mxu0 0.0
  %679 = vmatprep.subr.mxu0 0.0
  %680 = vmatpush1.msra.mxu0 0.0
  %681 = vmatprep.subr.mxu0 0.0
  %682 = vmatpush1.msra.mxu0 0.0
  %683 = vmatprep.subr.mxu0 0.0
  %684 = vmatpush1.msra.mxu0 0.0
  %685 = vmatprep.subr.mxu0 0.0
  %686 = vmatpush1.msra.mxu0 0.0
  %687 = vmatprep.subr.mxu0 0.0
  %688 = vmatpush1.msra.mxu0 0.0
  %689 = vmatprep.subr.mxu0 0.0
  %690 = vmatpush1.msra.mxu0 0.0
  %691 = vmatprep.subr.mxu0 0.0
  %692 = vmatpush1.msra.mxu0 0.0
  %693 = vmatprep.subr.mxu0 0.0
  %694 = vmatpush1.msra.mxu0 0.0
  %695 = vmatprep.subr.mxu0 0.0
  %696 = vmatpush1.msra.mxu0 0.0
  %697 = vmatprep.subr.mxu0 0.0
  %698 = vmatpush1.msra.mxu0 0.0
  %699 = vmatprep.subr.mxu0 0.0
  %700 = vmatpush1.msra.mxu0 0.0
  %701 = vmatprep.subr.mxu0 0.0
  %702 = vmatpush1.msra.mxu0 0.0
  %703 = vmatprep.subr.mxu0 0.0
  %704 = vmatpush1.msra.mxu0 0.0
  %705 = vmatprep.subr.mxu0 0.0
  %706 = vmatpush1.msra.mxu0 0.0
  %707 = vmatprep.subr.mxu0 0.0
  %708 = vmatpush1.msra.mxu0 0.0
  %709 = vmatprep.subr.mxu0 0.0
  %710 = vmatpush1.msra.mxu0 0.0
  %711 = vmatprep.subr.mxu0 0.0
  %712 = vmatpush1.msra.mxu0 0.0
  %713 = vmatprep.mubr.f32.mxu0 0.0
  %714 = vmatmul.mubr.f32.gmra.mrb[0].mxu0 %v647
  %v715 = vpop.f32.mrb[0].mxu0
  %v716 = vadd.f32 0.0, %v715
  %v717 = vpop.f32.mrb[0].mxu0
  %v718 = vadd.f32 0.0, %v717
  %719 = vdwg.mxu0
  %v720 = vadd.f32 %v183, %v716
  %v721 = vadd.f32 %v185, %v718
  %v722 = vxor.u32 %v720, 2147483648
  %v723 = vmul.f32 %v722, 1.442695
  %v724 = vpow.pop %v723
  %v725 = vadd.f32 %v724, 1.0
  %v726 = vrcp.pop %v725
  %v727 = vmul.f32 1.0, %v726
  %v728 = vtanh.pop %v721
  %v729 = vxor.u32 %v721, 2147483648
  %v730 = vmul.f32 %v729, 1.442695
  %v731 = vpow.pop %v730
  %v732 = vadd.f32 %v731, 1.0
  %v733 = vrcp.pop %v732
  %v734 = vmul.f32 1.0, %v733
  %v735 = vmul.f32 %v727, %v641
  %v736 = vmul.f32 %v727, %v728
  %738 = vrot.lane.b32.xlu0 %v736, 64
  %v739 = vpop.permute.xlu0 %738
  %v741 = vadd.f32 %v735, %v739
  %v742 = vtanh.pop %v741
  %v743 = vmul.f32 %v734, %v742
  %745 = vrot.lane.b32.xlu0 %v743, 64
  %v746 = vpop.permute.xlu0 %745
  %v747 = vsel %vm245, %v746, 0
  %749 = vmatprep.subr.mxu0 %v230
  %750 = vmatpush1.msra.mxu0 %v229
  %751 = vmatprep.subr.mxu0 %v232
  %752 = vmatpush1.msra.mxu0 %v231
  %753 = vmatprep.subr.mxu0 %v234
  %754 = vmatpush1.msra.mxu0 %v233
  %755 = vmatprep.subr.mxu0 %v236
  %756 = vmatpush1.msra.mxu0 %v235
  %757 = vmatprep.subr.mxu0 %v238
  %758 = vmatpush1.msra.mxu0 %v237
  %759 = vmatprep.subr.mxu0 %v240
  %760 = vmatpush1.msra.mxu0 %v239
  %761 = vmatprep.subr.mxu0 %v242
  %762 = vmatpush1.msra.mxu0 %v241
  %763 = vmatprep.subr.mxu0 %v244
  %764 = vmatpush1.msra.mxu0 %v243
  %765 = vmatprep.subr.mxu0 0.0
  %766 = vmatpush1.msra.mxu0 0.0
  %767 = vmatprep.subr.mxu0 0.0
  %768 = vmatpush1.msra.mxu0 0.0
  %769 = vmatprep.subr.mxu0 0.0
  %770 = vmatpush1.msra.mxu0 0.0
  %771 = vmatprep.subr.mxu0 0.0
  %772 = vmatpush1.msra.mxu0 0.0
  %773 = vmatprep.subr.mxu0 0.0
  %774 = vmatpush1.msra.mxu0 0.0
  %775 = vmatprep.subr.mxu0 0.0
  %776 = vmatpush1.msra.mxu0 0.0
  %777 = vmatprep.subr.mxu0 0.0
  %778 = vmatpush1.msra.mxu0 0.0
  %779 = vmatprep.subr.mxu0 0.0
  %780 = vmatpush1.msra.mxu0 0.0
  %781 = vmatprep.subr.mxu0 0.0
  %782 = vmatpush1.msra.mxu0 0.0
  %783 = vmatprep.subr.mxu0 0.0
  %784 = vmatpush1.msra.mxu0 0.0
  %785 = vmatprep.subr.mxu0 0.0
  %786 = vmatpush1.msra.mxu0 0.0
  %787 = vmatprep.subr.mxu0 0.0
  %788 = vmatpush1.msra.mxu0 0.0
  %789 = vmatprep.subr.mxu0 0.0
  %790 = vmatpush1.msra.mxu0 0.0
  %791 = vmatprep.subr.mxu0 0.0
  %792 = vmatpush1.msra.mxu0 0.0
  %793 = vmatprep.subr.mxu0 0.0
  %794 = vmatpush1.msra.mxu0 0.0
  %795 = vmatprep.subr.mxu0 0.0
  %796 = vmatpush1.msra.mxu0 0.0
  %797 = vmatprep.subr.mxu0 0.0
  %798 = vmatpush1.msra.mxu0 0.0
  %799 = vmatprep.subr.mxu0 0.0
  %800 = vmatpush1.msra.mxu0 0.0
  %801 = vmatprep.subr.mxu0 0.0
  %802 = vmatpush1.msra.mxu0 0.0
  %803 = vmatprep.subr.mxu0 0.0
  %804 = vmatpush1.msra.mxu0 0.0
  %805 = vmatprep.subr.mxu0 0.0
  %806 = vmatpush1.msra.mxu0 0.0
  %807 = vmatprep.subr.mxu0 0.0
  %808 = vmatpush1.msra.mxu0 0.0
  %809 = vmatprep.subr.mxu0 0.0
  %810 = vmatpush1.msra.mxu0 0.0
  %811 = vmatprep.subr.mxu0 0.0
  %812 = vmatpush1.msra.mxu0 0.0
  %813 = vmatprep.mubr.f32.mxu0 0.0
  %814 = vmatmul.mubr.f32.gmra.mrb[0].mxu0 %v747
  %v815 = vpop.f32.mrb[0].mxu0
  %v816 = vadd.f32 0.0, %v815
  %v817 = vpop.f32.mrb[0].mxu0
  %v818 = vadd.f32 0.0, %v817
  %819 = vdwg.mxu0
  %v820 = vadd.f32 %v189, %v816
  %v821 = vadd.f32 %v191, %v818
  %v822 = vxor.u32 %v820, 2147483648
  %v823 = vmul.f32 %v822, 1.442695
  %v824 = vpow.pop %v823
  %v825 = vadd.f32 %v824, 1.0
  %v826 = vrcp.pop %v825
  %v827 = vmul.f32 1.0, %v826
  %v828 = vtanh.pop %v821
  %v829 = vxor.u32 %v821, 2147483648
  %v830 = vmul.f32 %v829, 1.442695
  %v831 = vpow.pop %v830
  %v832 = vadd.f32 %v831, 1.0
  %v833 = vrcp.pop %v832
  %v834 = vmul.f32 1.0, %v833
  %v835 = vmul.f32 %v827, %v741
  %v836 = vmul.f32 %v827, %v828
  %838 = vrot.lane.b32.xlu0 %v836, 64
  %v839 = vpop.permute.xlu0 %838
  %v841 = vadd.f32 %v835, %v839
  %v842 = vtanh.pop %v841
  %v843 = vmul.f32 %v834, %v842
  %845 = vrot.lane.b32.xlu0 %v843, 64
  %v846 = vpop.permute.xlu0 %845
  %v847 = vsel %vm245, %v846, 0
  %849 = vmatprep.subr.mxu0 %v230
  %850 = vmatpush1.msra.mxu0 %v229
  %851 = vmatprep.subr.mxu0 %v232
  %852 = vmatpush1.msra.mxu0 %v231
  %853 = vmatprep.subr.mxu0 %v234
  %854 = vmatpush1.msra.mxu0 %v233
  %855 = vmatprep.subr.mxu0 %v236
  %856 = vmatpush1.msra.mxu0 %v235
  %857 = vmatprep.subr.mxu0 %v238
  %858 = vmatpush1.msra.mxu0 %v237
  %859 = vmatprep.subr.mxu0 %v240
  %860 = vmatpush1.msra.mxu0 %v239
  %861 = vmatprep.subr.mxu0 %v242
  %862 = vmatpush1.msra.mxu0 %v241
  %863 = vmatprep.subr.mxu0 %v244
  %864 = vmatpush1.msra.mxu0 %v243
  %865 = vmatprep.subr.mxu0 0.0
  %866 = vmatpush1.msra.mxu0 0.0
  %867 = vmatprep.subr.mxu0 0.0
  %868 = vmatpush1.msra.mxu0 0.0
  %869 = vmatprep.subr.mxu0 0.0
  %870 = vmatpush1.msra.mxu0 0.0
  %871 = vmatprep.subr.mxu0 0.0
  %872 = vmatpush1.msra.mxu0 0.0
  %873 = vmatprep.subr.mxu0 0.0
  %874 = vmatpush1.msra.mxu0 0.0
  %875 = vmatprep.subr.mxu0 0.0
  %876 = vmatpush1.msra.mxu0 0.0
  %877 = vmatprep.subr.mxu0 0.0
  %878 = vmatpush1.msra.mxu0 0.0
  %879 = vmatprep.subr.mxu0 0.0
  %880 = vmatpush1.msra.mxu0 0.0
  %881 = vmatprep.subr.mxu0 0.0
  %882 = vmatpush1.msra.mxu0 0.0
  %883 = vmatprep.subr.mxu0 0.0
  %884 = vmatpush1.msra.mxu0 0.0
  %885 = vmatprep.subr.mxu0 0.0
  %886 = vmatpush1.msra.mxu0 0.0
  %887 = vmatprep.subr.mxu0 0.0
  %888 = vmatpush1.msra.mxu0 0.0
  %889 = vmatprep.subr.mxu0 0.0
  %890 = vmatpush1.msra.mxu0 0.0
  %891 = vmatprep.subr.mxu0 0.0
  %892 = vmatpush1.msra.mxu0 0.0
  %893 = vmatprep.subr.mxu0 0.0
  %894 = vmatpush1.msra.mxu0 0.0
  %895 = vmatprep.subr.mxu0 0.0
  %896 = vmatpush1.msra.mxu0 0.0
  %897 = vmatprep.subr.mxu0 0.0
  %898 = vmatpush1.msra.mxu0 0.0
  %899 = vmatprep.subr.mxu0 0.0
  %900 = vmatpush1.msra.mxu0 0.0
  %901 = vmatprep.subr.mxu0 0.0
  %902 = vmatpush1.msra.mxu0 0.0
  %903 = vmatprep.subr.mxu0 0.0
  %904 = vmatpush1.msra.mxu0 0.0
  %905 = vmatprep.subr.mxu0 0.0
  %906 = vmatpush1.msra.mxu0 0.0
  %907 = vmatprep.subr.mxu0 0.0
  %908 = vmatpush1.msra.mxu0 0.0
  %909 = vmatprep.subr.mxu0 0.0
  %910 = vmatpush1.msra.mxu0 0.0
  %911 = vmatprep.subr.mxu0 0.0
  %912 = vmatpush1.msra.mxu0 0.0
  %913 = vmatprep.mubr.f32.mxu0 0.0
  %914 = vmatmul.mubr.f32.gmra.mrb[0].mxu0 %v847
  %v915 = vpop.f32.mrb[0].mxu0
  %v916 = vadd.f32 0.0, %v915
  %v917 = vpop.f32.mrb[0].mxu0
  %v918 = vadd.f32 0.0, %v917
  %919 = vdwg.mxu0
  %v920 = vadd.f32 %v195, %v916
  %v921 = vadd.f32 %v197, %v918
  %v922 = vxor.u32 %v920, 2147483648
  %v923 = vmul.f32 %v922, 1.442695
  %v924 = vpow.pop %v923
  %v925 = vadd.f32 %v924, 1.0
  %v926 = vrcp.pop %v925
  %v927 = vmul.f32 1.0, %v926
  %v928 = vtanh.pop %v921
  %v929 = vxor.u32 %v921, 2147483648
  %v930 = vmul.f32 %v929, 1.442695
  %v931 = vpow.pop %v930
  %v932 = vadd.f32 %v931, 1.0
  %v933 = vrcp.pop %v932
  %v934 = vmul.f32 1.0, %v933
  %v935 = vmul.f32 %v927, %v841
  %v936 = vmul.f32 %v927, %v928
  %938 = vrot.lane.b32.xlu0 %v936, 64
  %v939 = vpop.permute.xlu0 %938
  %v941 = vadd.f32 %v935, %v939
  %v942 = vtanh.pop %v941
  %v943 = vmul.f32 %v934, %v942
  %945 = vrot.lane.b32.xlu0 %v943, 64
  %v946 = vpop.permute.xlu0 %945
  %v947 = vsel %vm245, %v946, 0
  %949 = vmatprep.subr.mxu0 %v230
  %950 = vmatpush1.msra.mxu0 %v229
  %951 = vmatprep.subr.mxu0 %v232
  %952 = vmatpush1.msra.mxu0 %v231
  %953 = vmatprep.subr.mxu0 %v234
  %954 = vmatpush1.msra.mxu0 %v233
  %955 = vmatprep.subr.mxu0 %v236
  %956 = vmatpush1.msra.mxu0 %v235
  %957 = vmatprep.subr.mxu0 %v238
  %958 = vmatpush1.msra.mxu0 %v237
  %959 = vmatprep.subr.mxu0 %v240
  %960 = vmatpush1.msra.mxu0 %v239
  %961 = vmatprep.subr.mxu0 %v242
  %962 = vmatpush1.msra.mxu0 %v241
  %963 = vmatprep.subr.mxu0 %v244
  %964 = vmatpush1.msra.mxu0 %v243
  %965 = vmatprep.subr.mxu0 0.0
  %966 = vmatpush1.msra.mxu0 0.0
  %967 = vmatprep.subr.mxu0 0.0
  %968 = vmatpush1.msra.mxu0 0.0
  %969 = vmatprep.subr.mxu0 0.0
  %970 = vmatpush1.msra.mxu0 0.0
  %971 = vmatprep.subr.mxu0 0.0
  %972 = vmatpush1.msra.mxu0 0.0
  %973 = vmatprep.subr.mxu0 0.0
  %974 = vmatpush1.msra.mxu0 0.0
  %975 = vmatprep.subr.mxu0 0.0
  %976 = vmatpush1.msra.mxu0 0.0
  %977 = vmatprep.subr.mxu0 0.0
  %978 = vmatpush1.msra.mxu0 0.0
  %979 = vmatprep.subr.mxu0 0.0
  %980 = vmatpush1.msra.mxu0 0.0
  %981 = vmatprep.subr.mxu0 0.0
  %982 = vmatpush1.msra.mxu0 0.0
  %983 = vmatprep.subr.mxu0 0.0
  %984 = vmatpush1.msra.mxu0 0.0
  %985 = vmatprep.subr.mxu0 0.0
  %986 = vmatpush1.msra.mxu0 0.0
  %987 = vmatprep.subr.mxu0 0.0
  %988 = vmatpush1.msra.mxu0 0.0
  %989 = vmatprep.subr.mxu0 0.0
  %990 = vmatpush1.msra.mxu0 0.0
  %991 = vmatprep.subr.mxu0 0.0
  %992 = vmatpush1.msra.mxu0 0.0
  %993 = vmatprep.subr.mxu0 0.0
  %994 = vmatpush1.msra.mxu0 0.0
  %995 = vmatprep.subr.mxu0 0.0
  %996 = vmatpush1.msra.mxu0 0.0
  %997 = vmatprep.subr.mxu0 0.0
  %998 = vmatpush1.msra.mxu0 0.0
  %999 = vmatprep.subr.mxu0 0.0
  %1000 = vmatpush1.msra.mxu0 0.0
  %1001 = vmatprep.subr.mxu0 0.0
  %1002 = vmatpush1.msra.mxu0 0.0
  %1003 = vmatprep.subr.mxu0 0.0
  %1004 = vmatpush1.msra.mxu0 0.0
  %1005 = vmatprep.subr.mxu0 0.0
  %1006 = vmatpush1.msra.mxu0 0.0
  %1007 = vmatprep.subr.mxu0 0.0
  %1008 = vmatpush1.msra.mxu0 0.0
  %1009 = vmatprep.subr.mxu0 0.0
  %1010 = vmatpush1.msra.mxu0 0.0
  %1011 = vmatprep.subr.mxu0 0.0
  %1012 = vmatpush1.msra.mxu0 0.0
  %1013 = vmatprep.mubr.f32.mxu0 0.0
  %1014 = vmatmul.mubr.f32.gmra.mrb[0].mxu0 %v947
  %v1015 = vpop.f32.mrb[0].mxu0
  %v1016 = vadd.f32 0.0, %v1015
  %v1017 = vpop.f32.mrb[0].mxu0
  %v1018 = vadd.f32 0.0, %v1017
  %1019 = vdwg.mxu0
  %v1020 = vadd.f32 %v201, %v1016
  %v1021 = vadd.f32 %v203, %v1018
  %v1022 = vxor.u32 %v1020, 2147483648
  %v1023 = vmul.f32 %v1022, 1.442695
  %v1024 = vpow.pop %v1023
  %v1025 = vadd.f32 %v1024, 1.0
  %v1026 = vrcp.pop %v1025
  %v1027 = vmul.f32 1.0, %v1026
  %v1028 = vtanh.pop %v1021
  %v1029 = vxor.u32 %v1021, 2147483648
  %v1030 = vmul.f32 %v1029, 1.442695
  %v1031 = vpow.pop %v1030
  %v1032 = vadd.f32 %v1031, 1.0
  %v1033 = vrcp.pop %v1032
  %v1034 = vmul.f32 1.0, %v1033
  %v1035 = vmul.f32 %v1027, %v941
  %v1036 = vmul.f32 %v1027, %v1028
  %1038 = vrot.lane.b32.xlu0 %v1036, 64
  %v1039 = vpop.permute.xlu0 %1038
  %v1041 = vadd.f32 %v1035, %v1039
  %v1042 = vtanh.pop %v1041
  %v1043 = vmul.f32 %v1034, %v1042
  %1045 = vrot.lane.b32.xlu0 %v1043, 64
  %v1046 = vpop.permute.xlu0 %1045
  %v1047 = vsel %vm245, %v1046, 0
  %1049 = vmatprep.subr.mxu0 %v230
  %1050 = vmatpush1.msra.mxu0 %v229
  %1051 = vmatprep.subr.mxu0 %v232
  %1052 = vmatpush1.msra.mxu0 %v231
  %1053 = vmatprep.subr.mxu0 %v234
  %1054 = vmatpush1.msra.mxu0 %v233
  %1055 = vmatprep.subr.mxu0 %v236
  %1056 = vmatpush1.msra.mxu0 %v235
  %1057 = vmatprep.subr.mxu0 %v238
  %1058 = vmatpush1.msra.mxu0 %v237
  %1059 = vmatprep.subr.mxu0 %v240
  %1060 = vmatpush1.msra.mxu0 %v239
  %1061 = vmatprep.subr.mxu0 %v242
  %1062 = vmatpush1.msra.mxu0 %v241
  %1063 = vmatprep.subr.mxu0 %v244
  %1064 = vmatpush1.msra.mxu0 %v243
  %1065 = vmatprep.subr.mxu0 0.0
  %1066 = vmatpush1.msra.mxu0 0.0
  %1067 = vmatprep.subr.mxu0 0.0
  %1068 = vmatpush1.msra.mxu0 0.0
  %1069 = vmatprep.subr.mxu0 0.0
  %1070 = vmatpush1.msra.mxu0 0.0
  %1071 = vmatprep.subr.mxu0 0.0
  %1072 = vmatpush1.msra.mxu0 0.0
  %1073 = vmatprep.subr.mxu0 0.0
  %1074 = vmatpush1.msra.mxu0 0.0
  %1075 = vmatprep.subr.mxu0 0.0
  %1076 = vmatpush1.msra.mxu0 0.0
  %1077 = vmatprep.subr.mxu0 0.0
  %1078 = vmatpush1.msra.mxu0 0.0
  %1079 = vmatprep.subr.mxu0 0.0
  %1080 = vmatpush1.msra.mxu0 0.0
  %1081 = vmatprep.subr.mxu0 0.0
  %1082 = vmatpush1.msra.mxu0 0.0
  %1083 = vmatprep.subr.mxu0 0.0
  %1084 = vmatpush1.msra.mxu0 0.0
  %1085 = vmatprep.subr.mxu0 0.0
  %1086 = vmatpush1.msra.mxu0 0.0
  %1087 = vmatprep.subr.mxu0 0.0
  %1088 = vmatpush1.msra.mxu0 0.0
  %1089 = vmatprep.subr.mxu0 0.0
  %1090 = vmatpush1.msra.mxu0 0.0
  %1091 = vmatprep.subr.mxu0 0.0
  %1092 = vmatpush1.msra.mxu0 0.0
  %1093 = vmatprep.subr.mxu0 0.0
  %1094 = vmatpush1.msra.mxu0 0.0
  %1095 = vmatprep.subr.mxu0 0.0
  %1096 = vmatpush1.msra.mxu0 0.0
  %1097 = vmatprep.subr.mxu0 0.0
  %1098 = vmatpush1.msra.mxu0 0.0
  %1099 = vmatprep.subr.mxu0 0.0
  %1100 = vmatpush1.msra.mxu0 0.0
  %1101 = vmatprep.subr.mxu0 0.0
  %1102 = vmatpush1.msra.mxu0 0.0
  %1103 = vmatprep.subr.mxu0 0.0
  %1104 = vmatpush1.msra.mxu0 0.0
  %1105 = vmatprep.subr.mxu0 0.0
  %1106 = vmatpush1.msra.mxu0 0.0
  %1107 = vmatprep.subr.mxu0 0.0
  %1108 = vmatpush1.msra.mxu0 0.0
  %1109 = vmatprep.subr.mxu0 0.0
  %1110 = vmatpush1.msra.mxu0 0.0
  %1111 = vmatprep.subr.mxu0 0.0
  %1112 = vmatpush1.msra.mxu0 0.0
  %1113 = vmatprep.mubr.f32.mxu0 0.0
  %1114 = vmatmul.mubr.f32.gmra.mrb[0].mxu0 %v1047
  %v1115 = vpop.f32.mrb[0].mxu0
  %v1116 = vadd.f32 0.0, %v1115
  %v1117 = vpop.f32.mrb[0].mxu0
  %v1118 = vadd.f32 0.0, %v1117
  %1119 = vdwg.mxu0
  %v1120 = vadd.f32 %v207, %v1116
  %v1121 = vadd.f32 %v209, %v1118
  %v1122 = vxor.u32 %v1120, 2147483648
  %v1123 = vmul.f32 %v1122, 1.442695
  %v1124 = vpow.pop %v1123
  %v1125 = vadd.f32 %v1124, 1.0
  %v1126 = vrcp.pop %v1125
  %v1127 = vmul.f32 1.0, %v1126
  %v1128 = vtanh.pop %v1121
  %v1129 = vxor.u32 %v1121, 2147483648
  %v1130 = vmul.f32 %v1129, 1.442695
  %v1131 = vpow.pop %v1130
  %v1132 = vadd.f32 %v1131, 1.0
  %v1133 = vrcp.pop %v1132
  %v1134 = vmul.f32 1.0, %v1133
  %v1135 = vmul.f32 %v1127, %v1041
  %v1136 = vmul.f32 %v1127, %v1128
  %1138 = vrot.lane.b32.xlu0 %v1136, 64
  %v1139 = vpop.permute.xlu0 %1138
  %v1141 = vadd.f32 %v1135, %v1139
  %v1142 = vtanh.pop %v1141
  %v1143 = vmul.f32 %v1134, %v1142
  %1145 = vrot.lane.b32.xlu0 %v1143, 64
  %v1146 = vpop.permute.xlu0 %1145
  %v1147 = vsel %vm245, %v1146, 0
  %1149 = vmatprep.subr.mxu0 %v230
  %1150 = vmatpush1.msra.mxu0 %v229
  %1151 = vmatprep.subr.mxu0 %v232
  %1152 = vmatpush1.msra.mxu0 %v231
  %1153 = vmatprep.subr.mxu0 %v234
  %1154 = vmatpush1.msra.mxu0 %v233
  %1155 = vmatprep.subr.mxu0 %v236
  %1156 = vmatpush1.msra.mxu0 %v235
  %1157 = vmatprep.subr.mxu0 %v238
  %1158 = vmatpush1.msra.mxu0 %v237
  %1159 = vmatprep.subr.mxu0 %v240
  %1160 = vmatpush1.msra.mxu0 %v239
  %1161 = vmatprep.subr.mxu0 %v242
  %1162 = vmatpush1.msra.mxu0 %v241
  %1163 = vmatprep.subr.mxu0 %v244
  %1164 = vmatpush1.msra.mxu0 %v243
  %1165 = vmatprep.subr.mxu0 0.0
  %1166 = vmatpush1.msra.mxu0 0.0
  %1167 = vmatprep.subr.mxu0 0.0
  %1168 = vmatpush1.msra.mxu0 0.0
  %1169 = vmatprep.subr.mxu0 0.0
  %1170 = vmatpush1.msra.mxu0 0.0
  %1171 = vmatprep.subr.mxu0 0.0
  %1172 = vmatpush1.msra.mxu0 0.0
  %1173 = vmatprep.subr.mxu0 0.0
  %1174 = vmatpush1.msra.mxu0 0.0
  %1175 = vmatprep.subr.mxu0 0.0
  %1176 = vmatpush1.msra.mxu0 0.0
  %1177 = vmatprep.subr.mxu0 0.0
  %1178 = vmatpush1.msra.mxu0 0.0
  %1179 = vmatprep.subr.mxu0 0.0
  %1180 = vmatpush1.msra.mxu0 0.0
  %1181 = vmatprep.subr.mxu0 0.0
  %1182 = vmatpush1.msra.mxu0 0.0
  %1183 = vmatprep.subr.mxu0 0.0
  %1184 = vmatpush1.msra.mxu0 0.0
  %1185 = vmatprep.subr.mxu0 0.0
  %1186 = vmatpush1.msra.mxu0 0.0
  %1187 = vmatprep.subr.mxu0 0.0
  %1188 = vmatpush1.msra.mxu0 0.0
  %1189 = vmatprep.subr.mxu0 0.0
  %1190 = vmatpush1.msra.mxu0 0.0
  %1191 = vmatprep.subr.mxu0 0.0
  %1192 = vmatpush1.msra.mxu0 0.0
  %1193 = vmatprep.subr.mxu0 0.0
  %1194 = vmatpush1.msra.mxu0 0.0
  %1195 = vmatprep.subr.mxu0 0.0
  %1196 = vmatpush1.msra.mxu0 0.0
  %1197 = vmatprep.subr.mxu0 0.0
  %1198 = vmatpush1.msra.mxu0 0.0
  %1199 = vmatprep.subr.mxu0 0.0
  %1200 = vmatpush1.msra.mxu0 0.0
  %1201 = vmatprep.subr.mxu0 0.0
  %1202 = vmatpush1.msra.mxu0 0.0
  %1203 = vmatprep.subr.mxu0 0.0
  %1204 = vmatpush1.msra.mxu0 0.0
  %1205 = vmatprep.subr.mxu0 0.0
  %1206 = vmatpush1.msra.mxu0 0.0
  %1207 = vmatprep.subr.mxu0 0.0
  %1208 = vmatpush1.msra.mxu0 0.0
  %1209 = vmatprep.subr.mxu0 0.0
  %1210 = vmatpush1.msra.mxu0 0.0
  %1211 = vmatprep.subr.mxu0 0.0
  %1212 = vmatpush1.msra.mxu0 0.0
  %1213 = vmatprep.mubr.f32.mxu0 0.0
  %1214 = vmatmul.mubr.f32.gmra.mrb[0].mxu0 %v1147
  %v1215 = vpop.f32.mrb[0].mxu0
  %v1216 = vadd.f32 0.0, %v1215
  %v1217 = vpop.f32.mrb[0].mxu0
  %v1218 = vadd.f32 0.0, %v1217
  %1219 = vdwg.mxu0
  %v1220 = vadd.f32 %v213, %v1216
  %v1221 = vadd.f32 %v215, %v1218
  %v1222 = vxor.u32 %v1220, 2147483648
  %v1223 = vmul.f32 %v1222, 1.442695
  %v1224 = vpow.pop %v1223
  %v1225 = vadd.f32 %v1224, 1.0
  %v1226 = vrcp.pop %v1225
  %v1227 = vmul.f32 1.0, %v1226
  %v1228 = vtanh.pop %v1221
  %v1229 = vxor.u32 %v1221, 2147483648
  %v1230 = vmul.f32 %v1229, 1.442695
  %v1231 = vpow.pop %v1230
  %v1232 = vadd.f32 %v1231, 1.0
  %v1233 = vrcp.pop %v1232
  %v1234 = vmul.f32 1.0, %v1233
  %v1235 = vmul.f32 %v1227, %v1141
  %v1236 = vmul.f32 %v1227, %v1228
  %1238 = vrot.lane.b32.xlu0 %v1236, 64
  %v1239 = vpop.permute.xlu0 %1238
  %v1241 = vadd.f32 %v1235, %v1239
  %v1242 = vtanh.pop %v1241
  %v1243 = vmul.f32 %v1234, %v1242
  %1245 = vrot.lane.b32.xlu0 %v1243, 64
  %v1246 = vpop.permute.xlu0 %1245
  %v1247 = vsel %vm245, %v1246, 0
  %1249 = vmatprep.subr.mxu0 %v230
  %1250 = vmatpush1.msra.mxu0 %v229
  %1251 = vmatprep.subr.mxu0 %v232
  %1252 = vmatpush1.msra.mxu0 %v231
  %1253 = vmatprep.subr.mxu0 %v234
  %1254 = vmatpush1.msra.mxu0 %v233
  %1255 = vmatprep.subr.mxu0 %v236
  %1256 = vmatpush1.msra.mxu0 %v235
  %1257 = vmatprep.subr.mxu0 %v238
  %1258 = vmatpush1.msra.mxu0 %v237
  %1259 = vmatprep.subr.mxu0 %v240
  %1260 = vmatpush1.msra.mxu0 %v239
  %1261 = vmatprep.subr.mxu0 %v242
  %1262 = vmatpush1.msra.mxu0 %v241
  %1263 = vmatprep.subr.mxu0 %v244
  %1264 = vmatpush1.msra.mxu0 %v243
  %1265 = vmatprep.subr.mxu0 0.0
  %1266 = vmatpush1.msra.mxu0 0.0
  %1267 = vmatprep.subr.mxu0 0.0
  %1268 = vmatpush1.msra.mxu0 0.0
  %1269 = vmatprep.subr.mxu0 0.0
  %1270 = vmatpush1.msra.mxu0 0.0
  %1271 = vmatprep.subr.mxu0 0.0
  %1272 = vmatpush1.msra.mxu0 0.0
  %1273 = vmatprep.subr.mxu0 0.0
  %1274 = vmatpush1.msra.mxu0 0.0
  %1275 = vmatprep.subr.mxu0 0.0
  %1276 = vmatpush1.msra.mxu0 0.0
  %1277 = vmatprep.subr.mxu0 0.0
  %1278 = vmatpush1.msra.mxu0 0.0
  %1279 = vmatprep.subr.mxu0 0.0
  %1280 = vmatpush1.msra.mxu0 0.0
  %1281 = vmatprep.subr.mxu0 0.0
  %1282 = vmatpush1.msra.mxu0 0.0
  %1283 = vmatprep.subr.mxu0 0.0
  %1284 = vmatpush1.msra.mxu0 0.0
  %1285 = vmatprep.subr.mxu0 0.0
  %1286 = vmatpush1.msra.mxu0 0.0
  %1287 = vmatprep.subr.mxu0 0.0
  %1288 = vmatpush1.msra.mxu0 0.0
  %1289 = vmatprep.subr.mxu0 0.0
  %1290 = vmatpush1.msra.mxu0 0.0
  %1291 = vmatprep.subr.mxu0 0.0
  %1292 = vmatpush1.msra.mxu0 0.0
  %1293 = vmatprep.subr.mxu0 0.0
  %1294 = vmatpush1.msra.mxu0 0.0
  %1295 = vmatprep.subr.mxu0 0.0
  %1296 = vmatpush1.msra.mxu0 0.0
  %1297 = vmatprep.subr.mxu0 0.0
  %1298 = vmatpush1.msra.mxu0 0.0
  %1299 = vmatprep.subr.mxu0 0.0
  %1300 = vmatpush1.msra.mxu0 0.0
  %1301 = vmatprep.subr.mxu0 0.0
  %1302 = vmatpush1.msra.mxu0 0.0
  %1303 = vmatprep.subr.mxu0 0.0
  %1304 = vmatpush1.msra.mxu0 0.0
  %1305 = vmatprep.subr.mxu0 0.0
  %1306 = vmatpush1.msra.mxu0 0.0
  %1307 = vmatprep.subr.mxu0 0.0
  %1308 = vmatpush1.msra.mxu0 0.0
  %1309 = vmatprep.subr.mxu0 0.0
  %1310 = vmatpush1.msra.mxu0 0.0
  %1311 = vmatprep.subr.mxu0 0.0
  %1312 = vmatpush1.msra.mxu0 0.0
  %1313 = vmatprep.mubr.f32.mxu0 0.0
  %1314 = vmatmul.mubr.f32.gmra.mrb[0].mxu0 %v1247
  %v1315 = vpop.f32.mrb[0].mxu0
  %v1316 = vadd.f32 0.0, %v1315
  %v1317 = vpop.f32.mrb[0].mxu0
  %v1318 = vadd.f32 0.0, %v1317
  %1319 = vdwg.mxu0
  %v1320 = vadd.f32 %v219, %v1316
  %v1321 = vadd.f32 %v221, %v1318
  %v1322 = vxor.u32 %v1320, 2147483648
  %v1323 = vmul.f32 %v1322, 1.442695
  %v1324 = vpow.pop %v1323
  %v1325 = vadd.f32 %v1324, 1.0
  %v1326 = vrcp.pop %v1325
  %v1327 = vmul.f32 1.0, %v1326
  %v1328 = vtanh.pop %v1321
  %v1329 = vxor.u32 %v1321, 2147483648
  %v1330 = vmul.f32 %v1329, 1.442695
  %v1331 = vpow.pop %v1330
  %v1332 = vadd.f32 %v1331, 1.0
  %v1333 = vrcp.pop %v1332
  %v1334 = vmul.f32 1.0, %v1333
  %v1335 = vmul.f32 %v1327, %v1241
  %v1336 = vmul.f32 %v1327, %v1328
  %1338 = vrot.lane.b32.xlu0 %v1336, 64
  %v1339 = vpop.permute.xlu0 %1338
  %v1341 = vadd.f32 %v1335, %v1339
  %v1342 = vtanh.pop %v1341
  %v1343 = vmul.f32 %v1334, %v1342
  %1345 = vrot.lane.b32.xlu0 %v1343, 64
  %v1346 = vpop.permute.xlu0 %1345
  %v1347 = vsel %vm245, %v1346, 0
  %1349 = vmatprep.subr.mxu0 %v230
  %1350 = vmatpush1.msra.mxu0 %v229
  %1351 = vmatprep.subr.mxu0 %v232
  %1352 = vmatpush1.msra.mxu0 %v231
  %1353 = vmatprep.subr.mxu0 %v234
  %1354 = vmatpush1.msra.mxu0 %v233
  %1355 = vmatprep.subr.mxu0 %v236
  %1356 = vmatpush1.msra.mxu0 %v235
  %1357 = vmatprep.subr.mxu0 %v238
  %1358 = vmatpush1.msra.mxu0 %v237
  %1359 = vmatprep.subr.mxu0 %v240
  %1360 = vmatpush1.msra.mxu0 %v239
  %1361 = vmatprep.subr.mxu0 %v242
  %1362 = vmatpush1.msra.mxu0 %v241
  %1363 = vmatprep.subr.mxu0 %v244
  %1364 = vmatpush1.msra.mxu0 %v243
  %1365 = vmatprep.subr.mxu0 0.0
  %1366 = vmatpush1.msra.mxu0 0.0
  %1367 = vmatprep.subr.mxu0 0.0
  %1368 = vmatpush1.msra.mxu0 0.0
  %1369 = vmatprep.subr.mxu0 0.0
  %1370 = vmatpush1.msra.mxu0 0.0
  %1371 = vmatprep.subr.mxu0 0.0
  %1372 = vmatpush1.msra.mxu0 0.0
  %1373 = vmatprep.subr.mxu0 0.0
  %1374 = vmatpush1.msra.mxu0 0.0
  %1375 = vmatprep.subr.mxu0 0.0
  %1376 = vmatpush1.msra.mxu0 0.0
  %1377 = vmatprep.subr.mxu0 0.0
  %1378 = vmatpush1.msra.mxu0 0.0
  %1379 = vmatprep.subr.mxu0 0.0
  %1380 = vmatpush1.msra.mxu0 0.0
  %1381 = vmatprep.subr.mxu0 0.0
  %1382 = vmatpush1.msra.mxu0 0.0
  %1383 = vmatprep.subr.mxu0 0.0
  %1384 = vmatpush1.msra.mxu0 0.0
  %1385 = vmatprep.subr.mxu0 0.0
  %1386 = vmatpush1.msra.mxu0 0.0
  %1387 = vmatprep.subr.mxu0 0.0
  %1388 = vmatpush1.msra.mxu0 0.0
  %1389 = vmatprep.subr.mxu0 0.0
  %1390 = vmatpush1.msra.mxu0 0.0
  %1391 = vmatprep.subr.mxu0 0.0
  %1392 = vmatpush1.msra.mxu0 0.0
  %1393 = vmatprep.subr.mxu0 0.0
  %1394 = vmatpush1.msra.mxu0 0.0
  %1395 = vmatprep.subr.mxu0 0.0
  %1396 = vmatpush1.msra.mxu0 0.0
  %1397 = vmatprep.subr.mxu0 0.0
  %1398 = vmatpush1.msra.mxu0 0.0
  %1399 = vmatprep.subr.mxu0 0.0
  %1400 = vmatpush1.msra.mxu0 0.0
  %1401 = vmatprep.subr.mxu0 0.0
  %1402 = vmatpush1.msra.mxu0 0.0
  %1403 = vmatprep.subr.mxu0 0.0
  %1404 = vmatpush1.msra.mxu0 0.0
  %1405 = vmatprep.subr.mxu0 0.0
  %1406 = vmatpush1.msra.mxu0 0.0
  %1407 = vmatprep.subr.mxu0 0.0
  %1408 = vmatpush1.msra.mxu0 0.0
  %1409 = vmatprep.subr.mxu0 0.0
  %1410 = vmatpush1.msra.mxu0 0.0
  %1411 = vmatprep.subr.mxu0 0.0
  %1412 = vmatpush1.msra.mxu0 0.0
  %1413 = vmatprep.mubr.f32.mxu0 0.0
  %1414 = vmatmul.mubr.f32.gmra.mrb[0].mxu0 %v1347
  %v1415 = vpop.f32.mrb[0].mxu0
  %v1416 = vadd.f32 0.0, %v1415
  %v1417 = vpop.f32.mrb[0].mxu0
  %v1418 = vadd.f32 0.0, %v1417
  %1419 = vdwg.mxu0
  %v1420 = vadd.f32 %v225, %v1416
  %v1421 = vadd.f32 %v227, %v1418
  %v1422 = vxor.u32 %v1420, 2147483648
  %v1423 = vmul.f32 %v1422, 1.442695
  %v1424 = vpow.pop %v1423
  %v1425 = vadd.f32 %v1424, 1.0
  %v1426 = vrcp.pop %v1425
  %v1427 = vmul.f32 1.0, %v1426
  %v1428 = vtanh.pop %v1421
  %v1429 = vxor.u32 %v1421, 2147483648
  %v1430 = vmul.f32 %v1429, 1.442695
  %v1431 = vpow.pop %v1430
  %v1432 = vadd.f32 %v1431, 1.0
  %v1433 = vrcp.pop %v1432
  %v1434 = vmul.f32 1.0, %v1433
  %v1435 = vmul.f32 %v1427, %v1341
  %v1436 = vmul.f32 %v1427, %v1428
  %1438 = vrot.lane.b32.xlu0 %v1436, 64
  %v1439 = vpop.permute.xlu0 %1438
  %v1441 = vadd.f32 %v1435, %v1439
  %v1442 = vtanh.pop %v1441
  %v1443 = vmul.f32 %v1434, %v1442
  %v1444 = vld [vmem:[%s4] sm:$0xff]
  %v1445 = vld [vmem:[%s4 + $0x8] sm:$0xff]
  %v1446 = vld [vmem:[%s4 + $0x10] sm:$0xff]
  %v1447 = vld [vmem:[%s4 + $0x18] sm:$0xff]
  %v1448 = vld [vmem:[%s4 + $0x20] sm:$0xff]
  %v1449 = vld [vmem:[%s4 + $0x28] sm:$0xff]
  %v1450 = vld [vmem:[%s4 + $0x30] sm:$0xff]
  %v1451 = vld [vmem:[%s4 + $0x38] sm:$0xff]
  %v1452 = vld [vmem:[%s5] sm:$0x1]
  %v1454 = vlaneseq
  %v1455 = vshrl.u32 %v1454, 7
  %v1456 = vsub.s32 0, %v1455
  %v1457 = vrot.slane %v1452, %v1456
  %1460 = vrot.lane.b32.xlu0 %v1443, 64
  %v1461 = vpop.permute.xlu0 %1460
  %v1462 = vsel %vm245, %v1461, 0
  %1464 = vmatprep.subr.mxu0 0.0
  %1465 = vmatpush1.msra.mxu0 %v1444
  %1466 = vmatprep.subr.mxu0 0.0
  %1467 = vmatpush1.msra.mxu0 %v1445
  %1468 = vmatprep.subr.mxu0 0.0
  %1469 = vmatpush1.msra.mxu0 %v1446
  %1470 = vmatprep.subr.mxu0 0.0
  %1471 = vmatpush1.msra.mxu0 %v1447
  %1472 = vmatprep.subr.mxu0 0.0
  %1473 = vmatpush1.msra.mxu0 %v1448
  %1474 = vmatprep.subr.mxu0 0.0
  %1475 = vmatpush1.msra.mxu0 %v1449
  %1476 = vmatprep.subr.mxu0 0.0
  %1477 = vmatpush1.msra.mxu0 %v1450
  %1478 = vmatprep.subr.mxu0 0.0
  %1479 = vmatpush1.msra.mxu0 %v1451
  %1480 = vmatprep.subr.mxu0 0.0
  %1481 = vmatpush1.msra.mxu0 0.0
  %1482 = vmatprep.subr.mxu0 0.0
  %1483 = vmatpush1.msra.mxu0 0.0
  %1484 = vmatprep.subr.mxu0 0.0
  %1485 = vmatpush1.msra.mxu0 0.0
  %1486 = vmatprep.subr.mxu0 0.0
  %1487 = vmatpush1.msra.mxu0 0.0
  %1488 = vmatprep.subr.mxu0 0.0
  %1489 = vmatpush1.msra.mxu0 0.0
  %1490 = vmatprep.subr.mxu0 0.0
  %1491 = vmatpush1.msra.mxu0 0.0
  %1492 = vmatprep.subr.mxu0 0.0
  %1493 = vmatpush1.msra.mxu0 0.0
  %1494 = vmatprep.subr.mxu0 0.0
  %1495 = vmatpush1.msra.mxu0 0.0
  %1496 = vmatprep.subr.mxu0 0.0
  %1497 = vmatpush1.msra.mxu0 0.0
  %1498 = vmatprep.subr.mxu0 0.0
  %1499 = vmatpush1.msra.mxu0 0.0
  %1500 = vmatprep.subr.mxu0 0.0
  %1501 = vmatpush1.msra.mxu0 0.0
  %1502 = vmatprep.subr.mxu0 0.0
  %1503 = vmatpush1.msra.mxu0 0.0
  %1504 = vmatprep.subr.mxu0 0.0
  %1505 = vmatpush1.msra.mxu0 0.0
  %1506 = vmatprep.subr.mxu0 0.0
  %1507 = vmatpush1.msra.mxu0 0.0
  %1508 = vmatprep.subr.mxu0 0.0
  %1509 = vmatpush1.msra.mxu0 0.0
  %1510 = vmatprep.subr.mxu0 0.0
  %1511 = vmatpush1.msra.mxu0 0.0
  %1512 = vmatprep.subr.mxu0 0.0
  %1513 = vmatpush1.msra.mxu0 0.0
  %1514 = vmatprep.subr.mxu0 0.0
  %1515 = vmatpush1.msra.mxu0 0.0
  %1516 = vmatprep.subr.mxu0 0.0
  %1517 = vmatpush1.msra.mxu0 0.0
  %1518 = vmatprep.subr.mxu0 0.0
  %1519 = vmatpush1.msra.mxu0 0.0
  %1520 = vmatprep.subr.mxu0 0.0
  %1521 = vmatpush1.msra.mxu0 0.0
  %1522 = vmatprep.subr.mxu0 0.0
  %1523 = vmatpush1.msra.mxu0 0.0
  %1524 = vmatprep.subr.mxu0 0.0
  %1525 = vmatpush1.msra.mxu0 0.0
  %1526 = vmatprep.subr.mxu0 0.0
  %1527 = vmatpush1.msra.mxu0 0.0
  %1528 = vmatprep.mubr.f32.mxu0 0.0
  %1529 = vmatmul.mubr.f32.gmra.mrb[0].mxu0 %v1462
  %v1530 = vpop.f32.mrb[0].mxu0
  %v1531 = vadd.f32 %v1457, %v1530
  %v1532 = vpop.f32.mrb[0].mxu0
  %1533 = vdwg.mxu0
  %1534 = vst.msk [vmem:[%s6] sm:$0xff] %vm50, %v1531
  // Predicated region
  $region26: #{tpu_custom_call.1} parent=0 // pred_check
    _
  $region27: #{tpu_custom_call.1} parent=0 // pred_check_branch
    %1536 = sbr.rel (0) target = $region29
  $region28: #{tpu_custom_call.1} parent=0 // pred_region
    _
  $region29: #{tpu_custom_call.1} parent=0 // pred_fallthru
    _
  // Predicated region
  $region30: #{tpu_custom_call.1} parent=0 // pred_check
    _
  $region31: #{tpu_custom_call.1} parent=0 // pred_check_branch
    %1538 = sbr.rel (0) target = $region33
  $region32: #{tpu_custom_call.1} parent=0 // pred_region
    _
  $region33: #{tpu_custom_call.1} parent=0 // pred_fallthru
    _

</llo_original>
